<compile_context>
chip_gen: v6e
topology: v6e:2x2x1
jax: 0.10.0
libtpu: 0.0.40
codegen_flags: <defaults>
</compile_context>

<pallas_src>
import functools
import math

import jax
import jax.numpy as jnp
from jax.experimental import pallas as pl
from jax.experimental.pallas import tpu as pltpu


def _conv_layer_kernel(idx_ref, slab_ref, verts_ref, center_ref, sup_ref,
                       fold_ref, out_ref, acc_ref, *,
                       vertice_num, neighbor_num, sd):
    v = vertice_num
    n = neighbor_num

    # ---- per-(batch, vertex-tile) loop invariants ---------------------------
    col_ids = jax.lax.broadcasted_iota(jnp.int32, (1, v), 1)     # (1, v)
    verts = verts_ref[0]                                         # (tile_v, 3)
    sup = sup_ref[...]                                           # (3, c_pad), pad cols exactly 0
    acc_ref[...] = jnp.full_like(acc_ref, -jnp.inf)

    # ---- neighbor reduction: running max over the n neighbors ---------------
    def body(k, carry):
        # Exact gather emulation: one fused one-hot MXU matmul per neighbor
        # against the lane-aligned [support | xyz | 0] slab.
        idx_col = idx_ref[0, k]                                  # (tile_v, 1) int32
        onehot = (idx_col == col_ids).astype(jnp.float32)        # (tile_v, v)
        gathered = jnp.dot(onehot, slab_ref[0],
                           preferred_element_type=jnp.float32)   # (tile_v, c_pad)

        # neighbor direction, F.normalize(dim=-1) via rsqrt (EUP slot).
        nbr_xyz = gathered[:, sd:sd + 3]                         # (tile_v, 3)
        direction = nbr_xyz - verts
        sq = jnp.sum(direction * direction, axis=-1, keepdims=True)
        dir_norm = direction * jax.lax.rsqrt(jnp.maximum(sq, 1e-24))

        # theta = relu(dir_norm @ support_dir) as three broadcast FMAs (VPU).
        theta = jnp.maximum(
            dir_norm[:, 0:1] * sup[0:1, :]
            + dir_norm[:, 1:2] * sup[1:2, :]
            + dir_norm[:, 2:3] * sup[2:3, :], 0.0)               # (tile_v, c_pad)

        # theta is exactly 0 on the xyz / pad columns (sup pad cols are 0), so
        # the running max is 0 there and the zero fold rows drop it later.
        acc_ref[...] = jnp.maximum(acc_ref[...], theta * gathered)
        return carry

    jax.lax.fori_loop(0, n, body, 0, unroll=(n <= 8))

    # ---- finalize: sum over supports (stacked-identity matmul) + center -----
    act = jnp.dot(acc_ref[...], fold_ref[...],
                  preferred_element_type=jnp.float32)            # (tile_v, oc)
    out_ref[0] = (center_ref[0] + act).astype(out_ref.dtype)


def _pick_tile(v):
    # Cap at 128: keeps per-tile onehot/acc footprint bounded on v7x (64 MiB
    # VMEM); total gather FLOPs are tile-size independent.
    for cand in (128, 64, 32, 16, 8):
        if v % cand == 0:
            return cand
    return v


def conv_layer_forward(neighbor_index, vertices, feature_map,
                       weights, bias, directions, *, support_num, out_channel):
    bs, v, n = neighbor_index.shape
    oc = out_channel
    sd = support_num * oc
    c_pad = pl.cdiv(sd + 3, 128) * 128          # lane-aligned slab width
    tile_v = _pick_tile(v)
    f32 = jnp.float32

    vertices = vertices.astype(f32)
    feature_map = feature_map.astype(f32)
    weights = weights.astype(f32)
    bias = bias.astype(f32)
    directions = directions.astype(f32)

    # Hoisted (plain XLA): per-batch feature matmul, split into center/support.
    feature_out = feature_map @ weights + bias               # (bs, v, (s+1)*oc)
    center = feature_out[..., :oc]                           # (bs, v, oc)
    support = feature_out[..., oc:]                          # (bs, v, sd)

    # Lane-padded gather slab [support | xyz | 0]; pad columns exactly zero.
    slab = jnp.zeros((bs, v, c_pad), f32)
    slab = slab.at[..., :sd].set(support)
    slab = slab.at[..., sd:sd + 3].set(vertices)

    # Hoisted: F.normalize(directions, dim=0), zero-padded to c_pad columns.
    dnorm = jnp.sqrt(jnp.sum(directions * directions, axis=0, keepdims=True))
    sup_dir = directions / jnp.maximum(dnorm, 1e-12)         # (3, sd)
    sup_pad = jnp.zeros((3, c_pad), f32).at[:, :sd].set(sup_dir)

    # Stacked-identity fold matrix (sums the support axis); zero rows on pad.
    fold = jnp.zeros((c_pad, oc), f32)
    fold = fold.at[:sd, :].set(jnp.tile(jnp.eye(oc, dtype=f32), (support_num, 1)))

    # Neighbor indices as per-neighbor sublane columns: (bs, n, v, 1).
    idx_t = jnp.transpose(neighbor_index.astype(jnp.int32), (0, 2, 1))[..., None]

    kernel = functools.partial(_conv_layer_kernel, vertice_num=v,
                               neighbor_num=n, sd=sd)

    return pl.pallas_call(
        kernel,
        out_shape=jax.ShapeDtypeStruct((bs, v, oc), f32),
        grid_spec=pltpu.PrefetchScalarGridSpec(
            num_scalar_prefetch=0,
            grid=(bs, v // tile_v),
            in_specs=[
                pl.BlockSpec((1, n, tile_v, 1), lambda b, t: (b, 0, t, 0)),  # idx
                pl.BlockSpec((1, v, c_pad), lambda b, t: (b, 0, 0)),         # slab
                pl.BlockSpec((1, tile_v, 3), lambda b, t: (b, t, 0)),        # verts
                pl.BlockSpec((1, tile_v, oc), lambda b, t: (b, t, 0)),       # center
                pl.BlockSpec((3, c_pad), lambda b, t: (0, 0)),               # sup dirs
                pl.BlockSpec((c_pad, oc), lambda b, t: (0, 0)),              # fold
            ],
            out_specs=pl.BlockSpec((1, tile_v, oc), lambda b, t: (b, t, 0)),
            scratch_shapes=[
                pltpu.VMEM((tile_v, c_pad), f32),   # running-max accumulator
            ],
        ),
        compiler_params=pltpu.CompilerParams(
            dimension_semantics=("parallel", "parallel"),
            vmem_limit_bytes=48 * 1024 * 1024),
    )(idx_t, slab, vertices, center, sup_pad, fold)


# --- pure-JAX reference (mirrors the PyTorch forward) -----------------------
def _indexing_neighbor(t, idx):
    return jax.vmap(lambda tb, ib: tb[ib])(t, idx)


def _reference(neighbor_index, vertices, feature_map, weights, bias,
               directions, support_num, out_channel):
    bs, v, n = neighbor_index.shape
    neighbors = _indexing_neighbor(vertices, neighbor_index)        # (bs,v,n,3)
    direction = neighbors - vertices[:, :, None, :]
    nrm = jnp.linalg.norm(direction, axis=-1, keepdims=True)
    dir_norm = direction / jnp.maximum(nrm, 1e-12)
    dnorm = jnp.linalg.norm(directions, axis=0, keepdims=True)
    sup = directions / jnp.maximum(dnorm, 1e-12)
    theta = jnp.maximum(dir_norm @ sup, 0.0)                        # (bs,v,n,s*oc)
    feature_out = feature_map @ weights + bias
    center = feature_out[..., :out_channel]
    support = feature_out[..., out_channel:]
    supp_g = _indexing_neighbor(support, neighbor_index)            # (bs,v,n,s*oc)
    act = (theta * supp_g).reshape(bs, v, n, support_num, out_channel)
    act = jnp.max(act, axis=2).sum(axis=2)
    return center + act


if __name__ == "__main__":
    bs, v, n = 2, 16, 8
    in_channel, out_channel, support_num = 4, 8, 3

    key = jax.random.PRNGKey(0)
    k_idx, k_vert, k_feat, k_w, k_b, k_d = jax.random.split(key, 6)

    neighbor_index = jax.random.randint(k_idx, (bs, v, n), 0, v, dtype=jnp.int32)
    vertices = jax.random.normal(k_vert, (bs, v, 3), dtype=jnp.float32)
    feature_map = jax.random.normal(k_feat, (bs, v, in_channel), dtype=jnp.float32)

    # deterministic parameter init matching Conv_layer.initialize()
    stdv = 1.0 / math.sqrt(out_channel * (support_num + 1))
    weights = jax.random.uniform(k_w, (in_channel, (support_num + 1) * out_channel),
                                 minval=-stdv, maxval=stdv, dtype=jnp.float32)
    bias = jax.random.uniform(k_b, ((support_num + 1) * out_channel,),
                              minval=-stdv, maxval=stdv, dtype=jnp.float32)
    directions = jax.random.uniform(k_d, (3, support_num * out_channel),
                                    minval=-stdv, maxval=stdv, dtype=jnp.float32)

    out = conv_layer_forward(neighbor_index, vertices, feature_map,
                             weights, bias, directions,
                             support_num=support_num, out_channel=out_channel)
    out = jax.block_until_ready(out)

    ref = _reference(neighbor_index, vertices, feature_map, weights, bias,
                     directions, support_num, out_channel)
    assert out.shape == (bs, v, out_channel)
    assert jnp.allclose(out, ref, atol=1e-5, rtol=1e-5)

    print("KERNEL_OK")
</pallas_src>

<mosaic_0001>
module attributes {stable_mosaic.version = 11 : i64} {
  func.func @_conv_layer_kernel(%arg0: i32, %arg1: i32, %arg2: memref<1x8x16x1xi32, #tpu.memory_space<vmem>>, %arg3: memref<1x16x128xf32, #tpu.memory_space<vmem>>, %arg4: memref<1x16x3xf32, #tpu.memory_space<vmem>>, %arg5: memref<1x16x8xf32, #tpu.memory_space<vmem>>, %arg6: memref<3x128xf32, #tpu.memory_space<vmem>>, %arg7: memref<128x8xf32, #tpu.memory_space<vmem>>, %arg8: memref<1x16x8xf32, #tpu.memory_space<vmem>>, %arg9: memref<16x128xf32, #tpu.memory_space<vmem>>) attributes {dimension_semantics = [#tpu.dimension_semantics<parallel>, #tpu.dimension_semantics<parallel>], iteration_bounds = array<i64: 2, 1>, scalar_prefetch = 0 : i64, scratch_operands = 1 : i64, tpu.core_type = #tpu.core_type<tc>, window_params = [{transform_indices = @transform_0, window_bounds = array<i64: 1, 8, 16, 1>}, {transform_indices = @transform_1, window_bounds = array<i64: 1, 16, 128>}, {transform_indices = @transform_2, window_bounds = array<i64: 1, 16, 3>}, {transform_indices = @transform_3, window_bounds = array<i64: 1, 16, 8>}, {pipeline_mode = #tpu.pipeline_mode<synchronous>, transform_indices = @transform_4, window_bounds = array<i64: 3, 128>}, {pipeline_mode = #tpu.pipeline_mode<synchronous>, transform_indices = @transform_5, window_bounds = array<i64: 128, 8>}, {transform_indices = @transform_6, window_bounds = array<i64: 1, 16, 8>}]} {
    %0 = tpu.iota {dimensions = array<i32: 1>} : vector<1x16xi32>
    %c0 = arith.constant 0 : index
    %c0_0 = arith.constant 0 : index
    %c0_1 = arith.constant 0 : index
    %1 = vector.load %arg4[%c0, %c0_0, %c0_1] : memref<1x16x3xf32, #tpu.memory_space<vmem>>, vector<1x16x3xf32>
    %2 = vector.shape_cast %1 : vector<1x16x3xf32> to vector<16x3xf32>
    %c0_2 = arith.constant 0 : index
    %c0_3 = arith.constant 0 : index
    %3 = vector.load %arg6[%c0_2, %c0_3] : memref<3x128xf32, #tpu.memory_space<vmem>>, vector<3x128xf32>
    %cst = arith.constant 0xFF800000 : f32
    %4 = vector.broadcast %cst : f32 to vector<16x128xf32>
    %c0_4 = arith.constant 0 : index
    %c0_5 = arith.constant 0 : index
    %5 = vector.load %arg9[%c0_4, %c0_5] : memref<16x128xf32, #tpu.memory_space<vmem>>, vector<16x128xf32>
    tpu.vector_store %arg9[%c0_4, %c0_5], %4 {strides = array<i32>} : memref<16x128xf32, #tpu.memory_space<vmem>>, vector<16x128xf32>,
    %c0_i32 = arith.constant 0 : i32
    %c0_6 = arith.constant 0 : index
    %6 = arith.index_cast %c0_i32 : i32 to index
    %c0_7 = arith.constant 0 : index
    %c0_8 = arith.constant 0 : index
    %7 = vector.load %arg2[%c0_6, %6, %c0_7, %c0_8] : memref<1x8x16x1xi32, #tpu.memory_space<vmem>>, vector<1x1x16x1xi32>
    %8 = vector.shape_cast %7 : vector<1x1x16x1xi32> to vector<16x1xi32>
    %9 = vector.broadcast %8 : vector<16x1xi32> to vector<16x16xi32>
    %10 = vector.broadcast %0 : vector<1x16xi32> to vector<16x16xi32>
    %11 = arith.cmpi eq, %9, %10 : vector<16x16xi32>
    %12 = arith.extui %11 : vector<16x16xi1> to vector<16x16xi32>
    %13 = arith.sitofp %12 : vector<16x16xi32> to vector<16x16xf32>
    %c0_9 = arith.constant 0 : index
    %c0_10 = arith.constant 0 : index
    %c0_11 = arith.constant 0 : index
    %14 = vector.load %arg3[%c0_9, %c0_10, %c0_11] : memref<1x16x128xf32, #tpu.memory_space<vmem>>, vector<1x16x128xf32>
    %15 = vector.shape_cast %14 : vector<1x16x128xf32> to vector<16x128xf32>
    %cst_12 = arith.constant dense<0.000000e+00> : vector<16x128xf32>
    %16 = tpu.matmul %13, %15, %cst_12 {dimension_numbers = #tpu.dot_dimension_numbers<[1], [0], [0], [1], [0, 0, 1, 1], [], []>} : vector<16x16xf32>, vector<16x128xf32>, vector<16x128xf32> -> vector<16x128xf32>
    %17 = vector.extract_strided_slice %16 {offsets = [0, 24], sizes = [16, 3], strides = [1, 1]} : vector<16x128xf32> to vector<16x3xf32>
    %18 = arith.subf %17, %2 : vector<16x3xf32>
    %19 = arith.mulf %18, %18 : vector<16x3xf32>
    %cst_13 = arith.constant dense<0.000000e+00> : vector<16xf32>
    %20 = vector.multi_reduction <add>, %19, %cst_13 [1] : vector<16x3xf32> to vector<16xf32>
    %21 = vector.shape_cast %20 : vector<16xf32> to vector<16x1xf32>
    %cst_14 = arith.constant 1.000000e-24 : f32
    %22 = vector.broadcast %cst_14 : f32 to vector<16x1xf32>
    %23 = arith.maximumf %21, %22 : vector<16x1xf32>
    %24 = math.rsqrt %23 : vector<16x1xf32>
    %25 = vector.broadcast %24 : vector<16x1xf32> to vector<16x3xf32>
    %26 = arith.mulf %18, %25 : vector<16x3xf32>
    %27 = vector.extract_strided_slice %26 {offsets = [0, 0], sizes = [16, 1], strides = [1, 1]} : vector<16x3xf32> to vector<16x1xf32>
    %28 = vector.extract_strided_slice %3 {offsets = [0, 0], sizes = [1, 128], strides = [1, 1]} : vector<3x128xf32> to vector<1x128xf32>
    %29 = vector.broadcast %27 : vector<16x1xf32> to vector<16x128xf32>
    %30 = vector.broadcast %28 : vector<1x128xf32> to vector<16x128xf32>
    %31 = arith.mulf %29, %30 : vector<16x128xf32>
    %32 = vector.extract_strided_slice %26 {offsets = [0, 1], sizes = [16, 1], strides = [1, 1]} : vector<16x3xf32> to vector<16x1xf32>
    %33 = vector.extract_strided_slice %3 {offsets = [1, 0], sizes = [1, 128], strides = [1, 1]} : vector<3x128xf32> to vector<1x128xf32>
    %34 = vector.broadcast %32 : vector<16x1xf32> to vector<16x128xf32>
    %35 = vector.broadcast %33 : vector<1x128xf32> to vector<16x128xf32>
    %36 = arith.mulf %34, %35 : vector<16x128xf32>
    %37 = arith.addf %31, %36 : vector<16x128xf32>
    %38 = vector.extract_strided_slice %26 {offsets = [0, 2], sizes = [16, 1], strides = [1, 1]} : vector<16x3xf32> to vector<16x1xf32>
    %39 = vector.extract_strided_slice %3 {offsets = [2, 0], sizes = [1, 128], strides = [1, 1]} : vector<3x128xf32> to vector<1x128xf32>
    %40 = vector.broadcast %38 : vector<16x1xf32> to vector<16x128xf32>
    %41 = vector.broadcast %39 : vector<1x128xf32> to vector<16x128xf32>
    %42 = arith.mulf %40, %41 : vector<16x128xf32>
    %43 = arith.addf %37, %42 : vector<16x128xf32>
    %cst_15 = arith.constant 0.000000e+00 : f32
    %44 = vector.broadcast %cst_15 : f32 to vector<16x128xf32>
    %45 = arith.maximumf %43, %44 : vector<16x128xf32>
    %c0_16 = arith.constant 0 : index
    %c0_17 = arith.constant 0 : index
    %46 = vector.load %arg9[%c0_16, %c0_17] : memref<16x128xf32, #tpu.memory_space<vmem>>, vector<16x128xf32>
    %47 = arith.mulf %45, %16 : vector<16x128xf32>
    %48 = arith.maximumf %46, %47 : vector<16x128xf32>
    %c0_18 = arith.constant 0 : index
    %c0_19 = arith.constant 0 : index
    %49 = vector.load %arg9[%c0_18, %c0_19] : memref<16x128xf32, #tpu.memory_space<vmem>>, vector<16x128xf32>
    tpu.vector_store %arg9[%c0_18, %c0_19], %48 {strides = array<i32>} : memref<16x128xf32, #tpu.memory_space<vmem>>, vector<16x128xf32>,
    %c1_i32 = arith.constant 1 : i32
    %c0_20 = arith.constant 0 : index
    %50 = arith.index_cast %c1_i32 : i32 to index
    %c0_21 = arith.constant 0 : index
    %c0_22 = arith.constant 0 : index
    %51 = vector.load %arg2[%c0_20, %50, %c0_21, %c0_22] : memref<1x8x16x1xi32, #tpu.memory_space<vmem>>, vector<1x1x16x1xi32>
    %52 = vector.shape_cast %51 : vector<1x1x16x1xi32> to vector<16x1xi32>
    %53 = vector.broadcast %52 : vector<16x1xi32> to vector<16x16xi32>
    %54 = vector.broadcast %0 : vector<1x16xi32> to vector<16x16xi32>
    %55 = arith.cmpi eq, %53, %54 : vector<16x16xi32>
    %56 = arith.extui %55 : vector<16x16xi1> to vector<16x16xi32>
    %57 = arith.sitofp %56 : vector<16x16xi32> to vector<16x16xf32>
    %c0_23 = arith.constant 0 : index
    %c0_24 = arith.constant 0 : index
    %c0_25 = arith.constant 0 : index
    %58 = vector.load %arg3[%c0_23, %c0_24, %c0_25] : memref<1x16x128xf32, #tpu.memory_space<vmem>>, vector<1x16x128xf32>
    %59 = vector.shape_cast %58 : vector<1x16x128xf32> to vector<16x128xf32>
    %cst_26 = arith.constant dense<0.000000e+00> : vector<16x128xf32>
    %60 = tpu.matmul %57, %59, %cst_26 {dimension_numbers = #tpu.dot_dimension_numbers<[1], [0], [0], [1], [0, 0, 1, 1], [], []>} : vector<16x16xf32>, vector<16x128xf32>, vector<16x128xf32> -> vector<16x128xf32>
    %61 = vector.extract_strided_slice %60 {offsets = [0, 24], sizes = [16, 3], strides = [1, 1]} : vector<16x128xf32> to vector<16x3xf32>
    %62 = arith.subf %61, %2 : vector<16x3xf32>
    %63 = arith.mulf %62, %62 : vector<16x3xf32>
    %cst_27 = arith.constant dense<0.000000e+00> : vector<16xf32>
    %64 = vector.multi_reduction <add>, %63, %cst_27 [1] : vector<16x3xf32> to vector<16xf32>
    %65 = vector.shape_cast %64 : vector<16xf32> to vector<16x1xf32>
    %cst_28 = arith.constant 1.000000e-24 : f32
    %66 = vector.broadcast %cst_28 : f32 to vector<16x1xf32>
    %67 = arith.maximumf %65, %66 : vector<16x1xf32>
    %68 = math.rsqrt %67 : vector<16x1xf32>
    %69 = vector.broadcast %68 : vector<16x1xf32> to vector<16x3xf32>
    %70 = arith.mulf %62, %69 : vector<16x3xf32>
    %71 = vector.extract_strided_slice %70 {offsets = [0, 0], sizes = [16, 1], strides = [1, 1]} : vector<16x3xf32> to vector<16x1xf32>
    %72 = vector.extract_strided_slice %3 {offsets = [0, 0], sizes = [1, 128], strides = [1, 1]} : vector<3x128xf32> to vector<1x128xf32>
    %73 = vector.broadcast %71 : vector<16x1xf32> to vector<16x128xf32>
    %74 = vector.broadcast %72 : vector<1x128xf32> to vector<16x128xf32>
    %75 = arith.mulf %73, %74 : vector<16x128xf32>
    %76 = vector.extract_strided_slice %70 {offsets = [0, 1], sizes = [16, 1], strides = [1, 1]} : vector<16x3xf32> to vector<16x1xf32>
    %77 = vector.extract_strided_slice %3 {offsets = [1, 0], sizes = [1, 128], strides = [1, 1]} : vector<3x128xf32> to vector<1x128xf32>
    %78 = vector.broadcast %76 : vector<16x1xf32> to vector<16x128xf32>
    %79 = vector.broadcast %77 : vector<1x128xf32> to vector<16x128xf32>
    %80 = arith.mulf %78, %79 : vector<16x128xf32>
    %81 = arith.addf %75, %80 : vector<16x128xf32>
    %82 = vector.extract_strided_slice %70 {offsets = [0, 2], sizes = [16, 1], strides = [1, 1]} : vector<16x3xf32> to vector<16x1xf32>
    %83 = vector.extract_strided_slice %3 {offsets = [2, 0], sizes = [1, 128], strides = [1, 1]} : vector<3x128xf32> to vector<1x128xf32>
    %84 = vector.broadcast %82 : vector<16x1xf32> to vector<16x128xf32>
    %85 = vector.broadcast %83 : vector<1x128xf32> to vector<16x128xf32>
    %86 = arith.mulf %84, %85 : vector<16x128xf32>
    %87 = arith.addf %81, %86 : vector<16x128xf32>
    %cst_29 = arith.constant 0.000000e+00 : f32
    %88 = vector.broadcast %cst_29 : f32 to vector<16x128xf32>
    %89 = arith.maximumf %87, %88 : vector<16x128xf32>
    %c0_30 = arith.constant 0 : index
    %c0_31 = arith.constant 0 : index
    %90 = vector.load %arg9[%c0_30, %c0_31] : memref<16x128xf32, #tpu.memory_space<vmem>>, vector<16x128xf32>
    %91 = arith.mulf %89, %60 : vector<16x128xf32>
    %92 = arith.maximumf %90, %91 : vector<16x128xf32>
    %c0_32 = arith.constant 0 : index
    %c0_33 = arith.constant 0 : index
    %93 = vector.load %arg9[%c0_32, %c0_33] : memref<16x128xf32, #tpu.memory_space<vmem>>, vector<16x128xf32>
    tpu.vector_store %arg9[%c0_32, %c0_33], %92 {strides = array<i32>} : memref<16x128xf32, #tpu.memory_space<vmem>>, vector<16x128xf32>,
    %c2_i32 = arith.constant 2 : i32
    %c0_34 = arith.constant 0 : index
    %94 = arith.index_cast %c2_i32 : i32 to index
    %c0_35 = arith.constant 0 : index
    %c0_36 = arith.constant 0 : index
    %95 = vector.load %arg2[%c0_34, %94, %c0_35, %c0_36] : memref<1x8x16x1xi32, #tpu.memory_space<vmem>>, vector<1x1x16x1xi32>
    %96 = vector.shape_cast %95 : vector<1x1x16x1xi32> to vector<16x1xi32>
    %97 = vector.broadcast %96 : vector<16x1xi32> to vector<16x16xi32>
    %98 = vector.broadcast %0 : vector<1x16xi32> to vector<16x16xi32>
    %99 = arith.cmpi eq, %97, %98 : vector<16x16xi32>
    %100 = arith.extui %99 : vector<16x16xi1> to vector<16x16xi32>
    %101 = arith.sitofp %100 : vector<16x16xi32> to vector<16x16xf32>
    %c0_37 = arith.constant 0 : index
    %c0_38 = arith.constant 0 : index
    %c0_39 = arith.constant 0 : index
    %102 = vector.load %arg3[%c0_37, %c0_38, %c0_39] : memref<1x16x128xf32, #tpu.memory_space<vmem>>, vector<1x16x128xf32>
    %103 = vector.shape_cast %102 : vector<1x16x128xf32> to vector<16x128xf32>
    %cst_40 = arith.constant dense<0.000000e+00> : vector<16x128xf32>
    %104 = tpu.matmul %101, %103, %cst_40 {dimension_numbers = #tpu.dot_dimension_numbers<[1], [0], [0], [1], [0, 0, 1, 1], [], []>} : vector<16x16xf32>, vector<16x128xf32>, vector<16x128xf32> -> vector<16x128xf32>
    %105 = vector.extract_strided_slice %104 {offsets = [0, 24], sizes = [16, 3], strides = [1, 1]} : vector<16x128xf32> to vector<16x3xf32>
    %106 = arith.subf %105, %2 : vector<16x3xf32>
    %107 = arith.mulf %106, %106 : vector<16x3xf32>
    %cst_41 = arith.constant dense<0.000000e+00> : vector<16xf32>
    %108 = vector.multi_reduction <add>, %107, %cst_41 [1] : vector<16x3xf32> to vector<16xf32>
    %109 = vector.shape_cast %108 : vector<16xf32> to vector<16x1xf32>
    %cst_42 = arith.constant 1.000000e-24 : f32
    %110 = vector.broadcast %cst_42 : f32 to vector<16x1xf32>
    %111 = arith.maximumf %109, %110 : vector<16x1xf32>
    %112 = math.rsqrt %111 : vector<16x1xf32>
    %113 = vector.broadcast %112 : vector<16x1xf32> to vector<16x3xf32>
    %114 = arith.mulf %106, %113 : vector<16x3xf32>
    %115 = vector.extract_strided_slice %114 {offsets = [0, 0], sizes = [16, 1], strides = [1, 1]} : vector<16x3xf32> to vector<16x1xf32>
    %116 = vector.extract_strided_slice %3 {offsets = [0, 0], sizes = [1, 128], strides = [1, 1]} : vector<3x128xf32> to vector<1x128xf32>
    %117 = vector.broadcast %115 : vector<16x1xf32> to vector<16x128xf32>
    %118 = vector.broadcast %116 : vector<1x128xf32> to vector<16x128xf32>
    %119 = arith.mulf %117, %118 : vector<16x128xf32>
    %120 = vector.extract_strided_slice %114 {offsets = [0, 1], sizes = [16, 1], strides = [1, 1]} : vector<16x3xf32> to vector<16x1xf32>
    %121 = vector.extract_strided_slice %3 {offsets = [1, 0], sizes = [1, 128], strides = [1, 1]} : vector<3x128xf32> to vector<1x128xf32>
    %122 = vector.broadcast %120 : vector<16x1xf32> to vector<16x128xf32>
    %123 = vector.broadcast %121 : vector<1x128xf32> to vector<16x128xf32>
    %124 = arith.mulf %122, %123 : vector<16x128xf32>
    %125 = arith.addf %119, %124 : vector<16x128xf32>
    %126 = vector.extract_strided_slice %114 {offsets = [0, 2], sizes = [16, 1], strides = [1, 1]} : vector<16x3xf32> to vector<16x1xf32>
    %127 = vector.extract_strided_slice %3 {offsets = [2, 0], sizes = [1, 128], strides = [1, 1]} : vector<3x128xf32> to vector<1x128xf32>
    %128 = vector.broadcast %126 : vector<16x1xf32> to vector<16x128xf32>
    %129 = vector.broadcast %127 : vector<1x128xf32> to vector<16x128xf32>
    %130 = arith.mulf %128, %129 : vector<16x128xf32>
    %131 = arith.addf %125, %130 : vector<16x128xf32>
    %cst_43 = arith.constant 0.000000e+00 : f32
    %132 = vector.broadcast %cst_43 : f32 to vector<16x128xf32>
    %133 = arith.maximumf %131, %132 : vector<16x128xf32>
    %c0_44 = arith.constant 0 : index
    %c0_45 = arith.constant 0 : index
    %134 = vector.load %arg9[%c0_44, %c0_45] : memref<16x128xf32, #tpu.memory_space<vmem>>, vector<16x128xf32>
    %135 = arith.mulf %133, %104 : vector<16x128xf32>
    %136 = arith.maximumf %134, %135 : vector<16x128xf32>
    %c0_46 = arith.constant 0 : index
    %c0_47 = arith.constant 0 : index
    %137 = vector.load %arg9[%c0_46, %c0_47] : memref<16x128xf32, #tpu.memory_space<vmem>>, vector<16x128xf32>
    tpu.vector_store %arg9[%c0_46, %c0_47], %136 {strides = array<i32>} : memref<16x128xf32, #tpu.memory_space<vmem>>, vector<16x128xf32>,
    %c3_i32 = arith.constant 3 : i32
    %c0_48 = arith.constant 0 : index
    %138 = arith.index_cast %c3_i32 : i32 to index
    %c0_49 = arith.constant 0 : index
    %c0_50 = arith.constant 0 : index
    %139 = vector.load %arg2[%c0_48, %138, %c0_49, %c0_50] : memref<1x8x16x1xi32, #tpu.memory_space<vmem>>, vector<1x1x16x1xi32>
    %140 = vector.shape_cast %139 : vector<1x1x16x1xi32> to vector<16x1xi32>
    %141 = vector.broadcast %140 : vector<16x1xi32> to vector<16x16xi32>
    %142 = vector.broadcast %0 : vector<1x16xi32> to vector<16x16xi32>
    %143 = arith.cmpi eq, %141, %142 : vector<16x16xi32>
    %144 = arith.extui %143 : vector<16x16xi1> to vector<16x16xi32>
    %145 = arith.sitofp %144 : vector<16x16xi32> to vector<16x16xf32>
    %c0_51 = arith.constant 0 : index
    %c0_52 = arith.constant 0 : index
    %c0_53 = arith.constant 0 : index
    %146 = vector.load %arg3[%c0_51, %c0_52, %c0_53] : memref<1x16x128xf32, #tpu.memory_space<vmem>>, vector<1x16x128xf32>
    %147 = vector.shape_cast %146 : vector<1x16x128xf32> to vector<16x128xf32>
    %cst_54 = arith.constant dense<0.000000e+00> : vector<16x128xf32>
    %148 = tpu.matmul %145, %147, %cst_54 {dimension_numbers = #tpu.dot_dimension_numbers<[1], [0], [0], [1], [0, 0, 1, 1], [], []>} : vector<16x16xf32>, vector<16x128xf32>, vector<16x128xf32> -> vector<16x128xf32>
    %149 = vector.extract_strided_slice %148 {offsets = [0, 24], sizes = [16, 3], strides = [1, 1]} : vector<16x128xf32> to vector<16x3xf32>
    %150 = arith.subf %149, %2 : vector<16x3xf32>
    %151 = arith.mulf %150, %150 : vector<16x3xf32>
    %cst_55 = arith.constant dense<0.000000e+00> : vector<16xf32>
    %152 = vector.multi_reduction <add>, %151, %cst_55 [1] : vector<16x3xf32> to vector<16xf32>
    %153 = vector.shape_cast %152 : vector<16xf32> to vector<16x1xf32>
    %cst_56 = arith.constant 1.000000e-24 : f32
    %154 = vector.broadcast %cst_56 : f32 to vector<16x1xf32>
    %155 = arith.maximumf %153, %154 : vector<16x1xf32>
    %156 = math.rsqrt %155 : vector<16x1xf32>
    %157 = vector.broadcast %156 : vector<16x1xf32> to vector<16x3xf32>
    %158 = arith.mulf %150, %157 : vector<16x3xf32>
    %159 = vector.extract_strided_slice %158 {offsets = [0, 0], sizes = [16, 1], strides = [1, 1]} : vector<16x3xf32> to vector<16x1xf32>
    %160 = vector.extract_strided_slice %3 {offsets = [0, 0], sizes = [1, 128], strides = [1, 1]} : vector<3x128xf32> to vector<1x128xf32>
    %161 = vector.broadcast %159 : vector<16x1xf32> to vector<16x128xf32>
    %162 = vector.broadcast %160 : vector<1x128xf32> to vector<16x128xf32>
    %163 = arith.mulf %161, %162 : vector<16x128xf32>
    %164 = vector.extract_strided_slice %158 {offsets = [0, 1], sizes = [16, 1], strides = [1, 1]} : vector<16x3xf32> to vector<16x1xf32>
    %165 = vector.extract_strided_slice %3 {offsets = [1, 0], sizes = [1, 128], strides = [1, 1]} : vector<3x128xf32> to vector<1x128xf32>
    %166 = vector.broadcast %164 : vector<16x1xf32> to vector<16x128xf32>
    %167 = vector.broadcast %165 : vector<1x128xf32> to vector<16x128xf32>
    %168 = arith.mulf %166, %167 : vector<16x128xf32>
    %169 = arith.addf %163, %168 : vector<16x128xf32>
    %170 = vector.extract_strided_slice %158 {offsets = [0, 2], sizes = [16, 1], strides = [1, 1]} : vector<16x3xf32> to vector<16x1xf32>
    %171 = vector.extract_strided_slice %3 {offsets = [2, 0], sizes = [1, 128], strides = [1, 1]} : vector<3x128xf32> to vector<1x128xf32>
    %172 = vector.broadcast %170 : vector<16x1xf32> to vector<16x128xf32>
    %173 = vector.broadcast %171 : vector<1x128xf32> to vector<16x128xf32>
    %174 = arith.mulf %172, %173 : vector<16x128xf32>
    %175 = arith.addf %169, %174 : vector<16x128xf32>
    %cst_57 = arith.constant 0.000000e+00 : f32
    %176 = vector.broadcast %cst_57 : f32 to vector<16x128xf32>
    %177 = arith.maximumf %175, %176 : vector<16x128xf32>
    %c0_58 = arith.constant 0 : index
    %c0_59 = arith.constant 0 : index
    %178 = vector.load %arg9[%c0_58, %c0_59] : memref<16x128xf32, #tpu.memory_space<vmem>>, vector<16x128xf32>
    %179 = arith.mulf %177, %148 : vector<16x128xf32>
    %180 = arith.maximumf %178, %179 : vector<16x128xf32>
    %c0_60 = arith.constant 0 : index
    %c0_61 = arith.constant 0 : index
    %181 = vector.load %arg9[%c0_60, %c0_61] : memref<16x128xf32, #tpu.memory_space<vmem>>, vector<16x128xf32>
    tpu.vector_store %arg9[%c0_60, %c0_61], %180 {strides = array<i32>} : memref<16x128xf32, #tpu.memory_space<vmem>>, vector<16x128xf32>,
    %c4_i32 = arith.constant 4 : i32
    %c0_62 = arith.constant 0 : index
    %182 = arith.index_cast %c4_i32 : i32 to index
    %c0_63 = arith.constant 0 : index
    %c0_64 = arith.constant 0 : index
    %183 = vector.load %arg2[%c0_62, %182, %c0_63, %c0_64] : memref<1x8x16x1xi32, #tpu.memory_space<vmem>>, vector<1x1x16x1xi32>
    %184 = vector.shape_cast %183 : vector<1x1x16x1xi32> to vector<16x1xi32>
    %185 = vector.broadcast %184 : vector<16x1xi32> to vector<16x16xi32>
    %186 = vector.broadcast %0 : vector<1x16xi32> to vector<16x16xi32>
    %187 = arith.cmpi eq, %185, %186 : vector<16x16xi32>
    %188 = arith.extui %187 : vector<16x16xi1> to vector<16x16xi32>
    %189 = arith.sitofp %188 : vector<16x16xi32> to vector<16x16xf32>
    %c0_65 = arith.constant 0 : index
    %c0_66 = arith.constant 0 : index
    %c0_67 = arith.constant 0 : index
    %190 = vector.load %arg3[%c0_65, %c0_66, %c0_67] : memref<1x16x128xf32, #tpu.memory_space<vmem>>, vector<1x16x128xf32>
    %191 = vector.shape_cast %190 : vector<1x16x128xf32> to vector<16x128xf32>
    %cst_68 = arith.constant dense<0.000000e+00> : vector<16x128xf32>
    %192 = tpu.matmul %189, %191, %cst_68 {dimension_numbers = #tpu.dot_dimension_numbers<[1], [0], [0], [1], [0, 0, 1, 1], [], []>} : vector<16x16xf32>, vector<16x128xf32>, vector<16x128xf32> -> vector<16x128xf32>
    %193 = vector.extract_strided_slice %192 {offsets = [0, 24], sizes = [16, 3], strides = [1, 1]} : vector<16x128xf32> to vector<16x3xf32>
    %194 = arith.subf %193, %2 : vector<16x3xf32>
    %195 = arith.mulf %194, %194 : vector<16x3xf32>
    %cst_69 = arith.constant dense<0.000000e+00> : vector<16xf32>
    %196 = vector.multi_reduction <add>, %195, %cst_69 [1] : vector<16x3xf32> to vector<16xf32>
    %197 = vector.shape_cast %196 : vector<16xf32> to vector<16x1xf32>
    %cst_70 = arith.constant 1.000000e-24 : f32
    %198 = vector.broadcast %cst_70 : f32 to vector<16x1xf32>
    %199 = arith.maximumf %197, %198 : vector<16x1xf32>
    %200 = math.rsqrt %199 : vector<16x1xf32>
    %201 = vector.broadcast %200 : vector<16x1xf32> to vector<16x3xf32>
    %202 = arith.mulf %194, %201 : vector<16x3xf32>
    %203 = vector.extract_strided_slice %202 {offsets = [0, 0], sizes = [16, 1], strides = [1, 1]} : vector<16x3xf32> to vector<16x1xf32>
    %204 = vector.extract_strided_slice %3 {offsets = [0, 0], sizes = [1, 128], strides = [1, 1]} : vector<3x128xf32> to vector<1x128xf32>
    %205 = vector.broadcast %203 : vector<16x1xf32> to vector<16x128xf32>
    %206 = vector.broadcast %204 : vector<1x128xf32> to vector<16x128xf32>
    %207 = arith.mulf %205, %206 : vector<16x128xf32>
    %208 = vector.extract_strided_slice %202 {offsets = [0, 1], sizes = [16, 1], strides = [1, 1]} : vector<16x3xf32> to vector<16x1xf32>
    %209 = vector.extract_strided_slice %3 {offsets = [1, 0], sizes = [1, 128], strides = [1, 1]} : vector<3x128xf32> to vector<1x128xf32>
    %210 = vector.broadcast %208 : vector<16x1xf32> to vector<16x128xf32>
    %211 = vector.broadcast %209 : vector<1x128xf32> to vector<16x128xf32>
    %212 = arith.mulf %210, %211 : vector<16x128xf32>
    %213 = arith.addf %207, %212 : vector<16x128xf32>
    %214 = vector.extract_strided_slice %202 {offsets = [0, 2], sizes = [16, 1], strides = [1, 1]} : vector<16x3xf32> to vector<16x1xf32>
    %215 = vector.extract_strided_slice %3 {offsets = [2, 0], sizes = [1, 128], strides = [1, 1]} : vector<3x128xf32> to vector<1x128xf32>
    %216 = vector.broadcast %214 : vector<16x1xf32> to vector<16x128xf32>
    %217 = vector.broadcast %215 : vector<1x128xf32> to vector<16x128xf32>
    %218 = arith.mulf %216, %217 : vector<16x128xf32>
    %219 = arith.addf %213, %218 : vector<16x128xf32>
    %cst_71 = arith.constant 0.000000e+00 : f32
    %220 = vector.broadcast %cst_71 : f32 to vector<16x128xf32>
    %221 = arith.maximumf %219, %220 : vector<16x128xf32>
    %c0_72 = arith.constant 0 : index
    %c0_73 = arith.constant 0 : index
    %222 = vector.load %arg9[%c0_72, %c0_73] : memref<16x128xf32, #tpu.memory_space<vmem>>, vector<16x128xf32>
    %223 = arith.mulf %221, %192 : vector<16x128xf32>
    %224 = arith.maximumf %222, %223 : vector<16x128xf32>
    %c0_74 = arith.constant 0 : index
    %c0_75 = arith.constant 0 : index
    %225 = vector.load %arg9[%c0_74, %c0_75] : memref<16x128xf32, #tpu.memory_space<vmem>>, vector<16x128xf32>
    tpu.vector_store %arg9[%c0_74, %c0_75], %224 {strides = array<i32>} : memref<16x128xf32, #tpu.memory_space<vmem>>, vector<16x128xf32>,
    %c5_i32 = arith.constant 5 : i32
    %c0_76 = arith.constant 0 : index
    %226 = arith.index_cast %c5_i32 : i32 to index
    %c0_77 = arith.constant 0 : index
    %c0_78 = arith.constant 0 : index
    %227 = vector.load %arg2[%c0_76, %226, %c0_77, %c0_78] : memref<1x8x16x1xi32, #tpu.memory_space<vmem>>, vector<1x1x16x1xi32>
    %228 = vector.shape_cast %227 : vector<1x1x16x1xi32> to vector<16x1xi32>
    %229 = vector.broadcast %228 : vector<16x1xi32> to vector<16x16xi32>
    %230 = vector.broadcast %0 : vector<1x16xi32> to vector<16x16xi32>
    %231 = arith.cmpi eq, %229, %230 : vector<16x16xi32>
    %232 = arith.extui %231 : vector<16x16xi1> to vector<16x16xi32>
    %233 = arith.sitofp %232 : vector<16x16xi32> to vector<16x16xf32>
    %c0_79 = arith.constant 0 : index
    %c0_80 = arith.constant 0 : index
    %c0_81 = arith.constant 0 : index
    %234 = vector.load %arg3[%c0_79, %c0_80, %c0_81] : memref<1x16x128xf32, #tpu.memory_space<vmem>>, vector<1x16x128xf32>
    %235 = vector.shape_cast %234 : vector<1x16x128xf32> to vector<16x128xf32>
    %cst_82 = arith.constant dense<0.000000e+00> : vector<16x128xf32>
    %236 = tpu.matmul %233, %235, %cst_82 {dimension_numbers = #tpu.dot_dimension_numbers<[1], [0], [0], [1], [0, 0, 1, 1], [], []>} : vector<16x16xf32>, vector<16x128xf32>, vector<16x128xf32> -> vector<16x128xf32>
    %237 = vector.extract_strided_slice %236 {offsets = [0, 24], sizes = [16, 3], strides = [1, 1]} : vector<16x128xf32> to vector<16x3xf32>
    %238 = arith.subf %237, %2 : vector<16x3xf32>
    %239 = arith.mulf %238, %238 : vector<16x3xf32>
    %cst_83 = arith.constant dense<0.000000e+00> : vector<16xf32>
    %240 = vector.multi_reduction <add>, %239, %cst_83 [1] : vector<16x3xf32> to vector<16xf32>
    %241 = vector.shape_cast %240 : vector<16xf32> to vector<16x1xf32>
    %cst_84 = arith.constant 1.000000e-24 : f32
    %242 = vector.broadcast %cst_84 : f32 to vector<16x1xf32>
    %243 = arith.maximumf %241, %242 : vector<16x1xf32>
    %244 = math.rsqrt %243 : vector<16x1xf32>
    %245 = vector.broadcast %244 : vector<16x1xf32> to vector<16x3xf32>
    %246 = arith.mulf %238, %245 : vector<16x3xf32>
    %247 = vector.extract_strided_slice %246 {offsets = [0, 0], sizes = [16, 1], strides = [1, 1]} : vector<16x3xf32> to vector<16x1xf32>
    %248 = vector.extract_strided_slice %3 {offsets = [0, 0], sizes = [1, 128], strides = [1, 1]} : vector<3x128xf32> to vector<1x128xf32>
    %249 = vector.broadcast %247 : vector<16x1xf32> to vector<16x128xf32>
    %250 = vector.broadcast %248 : vector<1x128xf32> to vector<16x128xf32>
    %251 = arith.mulf %249, %250 : vector<16x128xf32>
    %252 = vector.extract_strided_slice %246 {offsets = [0, 1], sizes = [16, 1], strides = [1, 1]} : vector<16x3xf32> to vector<16x1xf32>
    %253 = vector.extract_strided_slice %3 {offsets = [1, 0], sizes = [1, 128], strides = [1, 1]} : vector<3x128xf32> to vector<1x128xf32>
    %254 = vector.broadcast %252 : vector<16x1xf32> to vector<16x128xf32>
    %255 = vector.broadcast %253 : vector<1x128xf32> to vector<16x128xf32>
    %256 = arith.mulf %254, %255 : vector<16x128xf32>
    %257 = arith.addf %251, %256 : vector<16x128xf32>
    %258 = vector.extract_strided_slice %246 {offsets = [0, 2], sizes = [16, 1], strides = [1, 1]} : vector<16x3xf32> to vector<16x1xf32>
    %259 = vector.extract_strided_slice %3 {offsets = [2, 0], sizes = [1, 128], strides = [1, 1]} : vector<3x128xf32> to vector<1x128xf32>
    %260 = vector.broadcast %258 : vector<16x1xf32> to vector<16x128xf32>
    %261 = vector.broadcast %259 : vector<1x128xf32> to vector<16x128xf32>
    %262 = arith.mulf %260, %261 : vector<16x128xf32>
    %263 = arith.addf %257, %262 : vector<16x128xf32>
    %cst_85 = arith.constant 0.000000e+00 : f32
    %264 = vector.broadcast %cst_85 : f32 to vector<16x128xf32>
    %265 = arith.maximumf %263, %264 : vector<16x128xf32>
    %c0_86 = arith.constant 0 : index
    %c0_87 = arith.constant 0 : index
    %266 = vector.load %arg9[%c0_86, %c0_87] : memref<16x128xf32, #tpu.memory_space<vmem>>, vector<16x128xf32>
    %267 = arith.mulf %265, %236 : vector<16x128xf32>
    %268 = arith.maximumf %266, %267 : vector<16x128xf32>
    %c0_88 = arith.constant 0 : index
    %c0_89 = arith.constant 0 : index
    %269 = vector.load %arg9[%c0_88, %c0_89] : memref<16x128xf32, #tpu.memory_space<vmem>>, vector<16x128xf32>
    tpu.vector_store %arg9[%c0_88, %c0_89], %268 {strides = array<i32>} : memref<16x128xf32, #tpu.memory_space<vmem>>, vector<16x128xf32>,
    %c6_i32 = arith.constant 6 : i32
    %c0_90 = arith.constant 0 : index
    %270 = arith.index_cast %c6_i32 : i32 to index
    %c0_91 = arith.constant 0 : index
    %c0_92 = arith.constant 0 : index
    %271 = vector.load %arg2[%c0_90, %270, %c0_91, %c0_92] : memref<1x8x16x1xi32, #tpu.memory_space<vmem>>, vector<1x1x16x1xi32>
    %272 = vector.shape_cast %271 : vector<1x1x16x1xi32> to vector<16x1xi32>
    %273 = vector.broadcast %272 : vector<16x1xi32> to vector<16x16xi32>
    %274 = vector.broadcast %0 : vector<1x16xi32> to vector<16x16xi32>
    %275 = arith.cmpi eq, %273, %274 : vector<16x16xi32>
    %276 = arith.extui %275 : vector<16x16xi1> to vector<16x16xi32>
    %277 = arith.sitofp %276 : vector<16x16xi32> to vector<16x16xf32>
    %c0_93 = arith.constant 0 : index
    %c0_94 = arith.constant 0 : index
    %c0_95 = arith.constant 0 : index
    %278 = vector.load %arg3[%c0_93, %c0_94, %c0_95] : memref<1x16x128xf32, #tpu.memory_space<vmem>>, vector<1x16x128xf32>
    %279 = vector.shape_cast %278 : vector<1x16x128xf32> to vector<16x128xf32>
    %cst_96 = arith.constant dense<0.000000e+00> : vector<16x128xf32>
    %280 = tpu.matmul %277, %279, %cst_96 {dimension_numbers = #tpu.dot_dimension_numbers<[1], [0], [0], [1], [0, 0, 1, 1], [], []>} : vector<16x16xf32>, vector<16x128xf32>, vector<16x128xf32> -> vector<16x128xf32>
    %281 = vector.extract_strided_slice %280 {offsets = [0, 24], sizes = [16, 3], strides = [1, 1]} : vector<16x128xf32> to vector<16x3xf32>
    %282 = arith.subf %281, %2 : vector<16x3xf32>
    %283 = arith.mulf %282, %282 : vector<16x3xf32>
    %cst_97 = arith.constant dense<0.000000e+00> : vector<16xf32>
    %284 = vector.multi_reduction <add>, %283, %cst_97 [1] : vector<16x3xf32> to vector<16xf32>
    %285 = vector.shape_cast %284 : vector<16xf32> to vector<16x1xf32>
    %cst_98 = arith.constant 1.000000e-24 : f32
    %286 = vector.broadcast %cst_98 : f32 to vector<16x1xf32>
    %287 = arith.maximumf %285, %286 : vector<16x1xf32>
    %288 = math.rsqrt %287 : vector<16x1xf32>
    %289 = vector.broadcast %288 : vector<16x1xf32> to vector<16x3xf32>
    %290 = arith.mulf %282, %289 : vector<16x3xf32>
    %291 = vector.extract_strided_slice %290 {offsets = [0, 0], sizes = [16, 1], strides = [1, 1]} : vector<16x3xf32> to vector<16x1xf32>
    %292 = vector.extract_strided_slice %3 {offsets = [0, 0], sizes = [1, 128], strides = [1, 1]} : vector<3x128xf32> to vector<1x128xf32>
    %293 = vector.broadcast %291 : vector<16x1xf32> to vector<16x128xf32>
    %294 = vector.broadcast %292 : vector<1x128xf32> to vector<16x128xf32>
    %295 = arith.mulf %293, %294 : vector<16x128xf32>
    %296 = vector.extract_strided_slice %290 {offsets = [0, 1], sizes = [16, 1], strides = [1, 1]} : vector<16x3xf32> to vector<16x1xf32>
    %297 = vector.extract_strided_slice %3 {offsets = [1, 0], sizes = [1, 128], strides = [1, 1]} : vector<3x128xf32> to vector<1x128xf32>
    %298 = vector.broadcast %296 : vector<16x1xf32> to vector<16x128xf32>
    %299 = vector.broadcast %297 : vector<1x128xf32> to vector<16x128xf32>
    %300 = arith.mulf %298, %299 : vector<16x128xf32>
    %301 = arith.addf %295, %300 : vector<16x128xf32>
    %302 = vector.extract_strided_slice %290 {offsets = [0, 2], sizes = [16, 1], strides = [1, 1]} : vector<16x3xf32> to vector<16x1xf32>
    %303 = vector.extract_strided_slice %3 {offsets = [2, 0], sizes = [1, 128], strides = [1, 1]} : vector<3x128xf32> to vector<1x128xf32>
    %304 = vector.broadcast %302 : vector<16x1xf32> to vector<16x128xf32>
    %305 = vector.broadcast %303 : vector<1x128xf32> to vector<16x128xf32>
    %306 = arith.mulf %304, %305 : vector<16x128xf32>
    %307 = arith.addf %301, %306 : vector<16x128xf32>
    %cst_99 = arith.constant 0.000000e+00 : f32
    %308 = vector.broadcast %cst_99 : f32 to vector<16x128xf32>
    %309 = arith.maximumf %307, %308 : vector<16x128xf32>
    %c0_100 = arith.constant 0 : index
    %c0_101 = arith.constant 0 : index
    %310 = vector.load %arg9[%c0_100, %c0_101] : memref<16x128xf32, #tpu.memory_space<vmem>>, vector<16x128xf32>
    %311 = arith.mulf %309, %280 : vector<16x128xf32>
    %312 = arith.maximumf %310, %311 : vector<16x128xf32>
    %c0_102 = arith.constant 0 : index
    %c0_103 = arith.constant 0 : index
    %313 = vector.load %arg9[%c0_102, %c0_103] : memref<16x128xf32, #tpu.memory_space<vmem>>, vector<16x128xf32>
    tpu.vector_store %arg9[%c0_102, %c0_103], %312 {strides = array<i32>} : memref<16x128xf32, #tpu.memory_space<vmem>>, vector<16x128xf32>,
    %c7_i32 = arith.constant 7 : i32
    %c0_104 = arith.constant 0 : index
    %314 = arith.index_cast %c7_i32 : i32 to index
    %c0_105 = arith.constant 0 : index
    %c0_106 = arith.constant 0 : index
    %315 = vector.load %arg2[%c0_104, %314, %c0_105, %c0_106] : memref<1x8x16x1xi32, #tpu.memory_space<vmem>>, vector<1x1x16x1xi32>
    %316 = vector.shape_cast %315 : vector<1x1x16x1xi32> to vector<16x1xi32>
    %317 = vector.broadcast %316 : vector<16x1xi32> to vector<16x16xi32>
    %318 = vector.broadcast %0 : vector<1x16xi32> to vector<16x16xi32>
    %319 = arith.cmpi eq, %317, %318 : vector<16x16xi32>
    %320 = arith.extui %319 : vector<16x16xi1> to vector<16x16xi32>
    %321 = arith.sitofp %320 : vector<16x16xi32> to vector<16x16xf32>
    %c0_107 = arith.constant 0 : index
    %c0_108 = arith.constant 0 : index
    %c0_109 = arith.constant 0 : index
    %322 = vector.load %arg3[%c0_107, %c0_108, %c0_109] : memref<1x16x128xf32, #tpu.memory_space<vmem>>, vector<1x16x128xf32>
    %323 = vector.shape_cast %322 : vector<1x16x128xf32> to vector<16x128xf32>
    %cst_110 = arith.constant dense<0.000000e+00> : vector<16x128xf32>
    %324 = tpu.matmul %321, %323, %cst_110 {dimension_numbers = #tpu.dot_dimension_numbers<[1], [0], [0], [1], [0, 0, 1, 1], [], []>} : vector<16x16xf32>, vector<16x128xf32>, vector<16x128xf32> -> vector<16x128xf32>
    %325 = vector.extract_strided_slice %324 {offsets = [0, 24], sizes = [16, 3], strides = [1, 1]} : vector<16x128xf32> to vector<16x3xf32>
    %326 = arith.subf %325, %2 : vector<16x3xf32>
    %327 = arith.mulf %326, %326 : vector<16x3xf32>
    %cst_111 = arith.constant dense<0.000000e+00> : vector<16xf32>
    %328 = vector.multi_reduction <add>, %327, %cst_111 [1] : vector<16x3xf32> to vector<16xf32>
    %329 = vector.shape_cast %328 : vector<16xf32> to vector<16x1xf32>
    %cst_112 = arith.constant 1.000000e-24 : f32
    %330 = vector.broadcast %cst_112 : f32 to vector<16x1xf32>
    %331 = arith.maximumf %329, %330 : vector<16x1xf32>
    %332 = math.rsqrt %331 : vector<16x1xf32>
    %333 = vector.broadcast %332 : vector<16x1xf32> to vector<16x3xf32>
    %334 = arith.mulf %326, %333 : vector<16x3xf32>
    %335 = vector.extract_strided_slice %334 {offsets = [0, 0], sizes = [16, 1], strides = [1, 1]} : vector<16x3xf32> to vector<16x1xf32>
    %336 = vector.extract_strided_slice %3 {offsets = [0, 0], sizes = [1, 128], strides = [1, 1]} : vector<3x128xf32> to vector<1x128xf32>
    %337 = vector.broadcast %335 : vector<16x1xf32> to vector<16x128xf32>
    %338 = vector.broadcast %336 : vector<1x128xf32> to vector<16x128xf32>
    %339 = arith.mulf %337, %338 : vector<16x128xf32>
    %340 = vector.extract_strided_slice %334 {offsets = [0, 1], sizes = [16, 1], strides = [1, 1]} : vector<16x3xf32> to vector<16x1xf32>
    %341 = vector.extract_strided_slice %3 {offsets = [1, 0], sizes = [1, 128], strides = [1, 1]} : vector<3x128xf32> to vector<1x128xf32>
    %342 = vector.broadcast %340 : vector<16x1xf32> to vector<16x128xf32>
    %343 = vector.broadcast %341 : vector<1x128xf32> to vector<16x128xf32>
    %344 = arith.mulf %342, %343 : vector<16x128xf32>
    %345 = arith.addf %339, %344 : vector<16x128xf32>
    %346 = vector.extract_strided_slice %334 {offsets = [0, 2], sizes = [16, 1], strides = [1, 1]} : vector<16x3xf32> to vector<16x1xf32>
    %347 = vector.extract_strided_slice %3 {offsets = [2, 0], sizes = [1, 128], strides = [1, 1]} : vector<3x128xf32> to vector<1x128xf32>
    %348 = vector.broadcast %346 : vector<16x1xf32> to vector<16x128xf32>
    %349 = vector.broadcast %347 : vector<1x128xf32> to vector<16x128xf32>
    %350 = arith.mulf %348, %349 : vector<16x128xf32>
    %351 = arith.addf %345, %350 : vector<16x128xf32>
    %cst_113 = arith.constant 0.000000e+00 : f32
    %352 = vector.broadcast %cst_113 : f32 to vector<16x128xf32>
    %353 = arith.maximumf %351, %352 : vector<16x128xf32>
    %c0_114 = arith.constant 0 : index
    %c0_115 = arith.constant 0 : index
    %354 = vector.load %arg9[%c0_114, %c0_115] : memref<16x128xf32, #tpu.memory_space<vmem>>, vector<16x128xf32>
    %355 = arith.mulf %353, %324 : vector<16x128xf32>
    %356 = arith.maximumf %354, %355 : vector<16x128xf32>
    %c0_116 = arith.constant 0 : index
    %c0_117 = arith.constant 0 : index
    %357 = vector.load %arg9[%c0_116, %c0_117] : memref<16x128xf32, #tpu.memory_space<vmem>>, vector<16x128xf32>
    tpu.vector_store %arg9[%c0_116, %c0_117], %356 {strides = array<i32>} : memref<16x128xf32, #tpu.memory_space<vmem>>, vector<16x128xf32>,
    %c8_i32 = arith.constant 8 : i32
    %c0_118 = arith.constant 0 : index
    %c0_119 = arith.constant 0 : index
    %358 = vector.load %arg9[%c0_118, %c0_119] : memref<16x128xf32, #tpu.memory_space<vmem>>, vector<16x128xf32>
    %c0_120 = arith.constant 0 : index
    %c0_121 = arith.constant 0 : index
    %359 = vector.load %arg7[%c0_120, %c0_121] : memref<128x8xf32, #tpu.memory_space<vmem>>, vector<128x8xf32>
    %cst_122 = arith.constant dense<0.000000e+00> : vector<16x8xf32>
    %360 = tpu.matmul %358, %359, %cst_122 {dimension_numbers = #tpu.dot_dimension_numbers<[1], [0], [0], [1], [0, 0, 1, 1], [], []>} : vector<16x128xf32>, vector<128x8xf32>, vector<16x8xf32> -> vector<16x8xf32>
    %c0_123 = arith.constant 0 : index
    %c0_124 = arith.constant 0 : index
    %c0_125 = arith.constant 0 : index
    %361 = vector.load %arg5[%c0_123, %c0_124, %c0_125] : memref<1x16x8xf32, #tpu.memory_space<vmem>>, vector<1x16x8xf32>
    %362 = vector.shape_cast %361 : vector<1x16x8xf32> to vector<16x8xf32>
    %363 = arith.addf %362, %360 : vector<16x8xf32>
    %c0_126 = arith.constant 0 : index
    %c0_127 = arith.constant 0 : index
    %c0_128 = arith.constant 0 : index
    %364 = vector.load %arg8[%c0_126, %c0_127, %c0_128] : memref<1x16x8xf32, #tpu.memory_space<vmem>>, vector<1x16x8xf32>
    %365 = vector.shape_cast %364 : vector<1x16x8xf32> to vector<16x8xf32>
    %366 = vector.shape_cast %363 : vector<16x8xf32> to vector<1x16x8xf32>
    tpu.vector_store %arg8[%c0_126, %c0_127, %c0_128], %366 {strides = array<i32>} : memref<1x16x8xf32, #tpu.memory_space<vmem>>, vector<1x16x8xf32>,
    return
  }
  func.func @transform_0(%arg0: i32, %arg1: i32) -> (i32, i32, i32, i32) {
    %c0_i32 = arith.constant 0 : i32
    %c0_i32_0 = arith.constant 0 : i32
    %c0_i32_1 = arith.constant 0 : i32
    return %arg0, %c0_i32, %arg1, %c0_i32_0 : i32, i32, i32, i32
  }
  func.func @transform_1(%arg0: i32, %arg1: i32) -> (i32, i32, i32) {
    %c0_i32 = arith.constant 0 : i32
    %c0_i32_0 = arith.constant 0 : i32
    %c0_i32_1 = arith.constant 0 : i32
    return %arg0, %c0_i32, %c0_i32_0 : i32, i32, i32
  }
  func.func @transform_2(%arg0: i32, %arg1: i32) -> (i32, i32, i32) {
    %c0_i32 = arith.constant 0 : i32
    %c0_i32_0 = arith.constant 0 : i32
    return %arg0, %arg1, %c0_i32 : i32, i32, i32
  }
  func.func @transform_3(%arg0: i32, %arg1: i32) -> (i32, i32, i32) {
    %c0_i32 = arith.constant 0 : i32
    %c0_i32_0 = arith.constant 0 : i32
    return %arg0, %arg1, %c0_i32 : i32, i32, i32
  }
  func.func @transform_4(%arg0: i32, %arg1: i32) -> (i32, i32) {
    %c0_i32 = arith.constant 0 : i32
    %c0_i32_0 = arith.constant 0 : i32
    %c0_i32_1 = arith.constant 0 : i32
    return %c0_i32, %c0_i32_0 : i32, i32
  }
  func.func @transform_5(%arg0: i32, %arg1: i32) -> (i32, i32) {
    %c0_i32 = arith.constant 0 : i32
    %c0_i32_0 = arith.constant 0 : i32
    %c0_i32_1 = arith.constant 0 : i32
    return %c0_i32, %c0_i32_0 : i32, i32
  }
  func.func @transform_6(%arg0: i32, %arg1: i32) -> (i32, i32, i32) {
    %c0_i32 = arith.constant 0 : i32
    %c0_i32_0 = arith.constant 0 : i32
    return %arg0, %arg1, %c0_i32 : i32, i32, i32
  }
}

</mosaic_0001>

<llo_original>
// kernel: tpu_custom_call.1
$region0: #{tpu_custom_call.1}
  #allocation0 [shape = 'u32[]', space=smem, size = 0x4, offset = 0x4, fixed_abs, tag = 'smem constant byte address 0x4 - core index']
  #allocation1 [shape = 'u32[144,128]{1,0:T(1,128)}', space=vmem, size = 0x12000, scoped, tag = 'internal scratch']
  #allocation2 [shape = 'f32[16,128]{1,0:T(8,128)}', space=vmem, size = 0x2000, scoped, tag = 'scratch operand']
  %s0 = inlined_call_operand.vmem [shape: s32[2,8,16,1], index: 0, kind: input, shape index: {}]
  %s1 = inlined_call_operand.vmem [shape: f32[2,16,128], index: 1, kind: input, shape index: {}]
  %s2 = inlined_call_operand.vmem [shape: f32[2,16,3], index: 2, kind: input, shape index: {}]
  %s3 = inlined_call_operand.vmem [shape: f32[2,16,8], index: 3, kind: input, shape index: {}]
  %s4 = inlined_call_operand.vmem [shape: f32[3,128], index: 4, kind: input, shape index: {}]
  %s5 = inlined_call_operand.vmem [shape: f32[128,8], index: 5, kind: input, shape index: {}]
  %s6 = inlined_call_operand.vmem [shape: f32[2,16,8], index: 6, kind: output, shape index: {}]
  %s7 = sld [smem:[#allocation0]]
  $region57: #{tpu_custom_call.1} parent=0
    _
  %s9 = ssub.s32 1, %s7
  %s10 = scalar_select 0, %s9, %s7
  loop: start=0, step=1, limit=4
  $region2: #{tpu_custom_call.1} parent=0 // loop_pre_header
    _
  $region3: #{tpu_custom_call.1} parent=0 // loop_header
    %s12 = sphi 0, %s16
    %p13 = scmp.ge.s32.totalorder %s12, 4
    %s19 = sphi 0, %s31
    %s20 = sphi 0, %s27
    %s21 = sphi 0, %s19
    %s22 = sphi 0, %s20
    %s23 = sphi 0, %s21
    %s24 = sphi 0, %s22
    %s36 = sphi 0, %s38
    %s39 = sphi 0, %s36
    %s40 = sphi 0, %s39
    %s56 = sphi 0, %s40
    %s62 = sphi 0, %s64
    %s65 = sphi 0, %s62
    %s66 = sphi 0, %s65
    %s82 = sphi 0, %s66
    %s90 = sphi 0, %s92
    %s93 = sphi 0, %s90
    %s94 = sphi 0, %s93
    %s110 = sphi 0, %s94
    %s118 = sphi 0, %s120
    %s121 = sphi 0, %s118
    %s122 = sphi 0, %s121
    %s138 = sphi 0, %s122
    %s142 = sphi 0, %s142
    %s144 = sphi 0, %s142
    %s145 = sphi 0, %s144
    %s159 = sphi 0, %s145
    %s163 = sphi 0, %s163
    %s165 = sphi 0, %s163
    %s166 = sphi 0, %s165
    %s180 = sphi 0, %s166
    %s188 = sphi 0, %s190
    %s191 = sphi 0, %s188
    %s192 = sphi 0, %s191
    %s208 = sphi 0, %s192
  $region4: #{tpu_custom_call.1} parent=0 // loop_header_branch
    %15 = sbr.rel (%p13) target = $region8
  $region5: #{tpu_custom_call.1} parent=0 // loop_body
    %s17 = ssub.s32 %s12, 1
    %s18 = ssub.s32 %s12, 2
    %s25 = sadd.s32 1, %s20
    %p26 = scmp.ge.s32.totalorder %s25, 1
    %s27 = scalar_select %p26, 0, %s25
    %s28 = sadd.s32 1, %s19
    %s29 = scalar_select %p26, %s28, %s19
    %p30 = scmp.ge.s32.totalorder %s29, 2
    %s31 = scalar_select %p30, 0, %s29
    %s32 = ssub.s32 %s19, %s31
    %s33 = ssub.s32 %s20, %s27
    %s34 = sor.u32 %s32, %s33
    %p35 = scmp.eq.s32.totalorder %s34, 0
    %s37 = sadd.s32 %s36, 1
    %s38 = scalar_select %p35, %s36, %s37
    %p41 = pneg %p35
    %p42 = scmp.eq.s32.totalorder %s12, 1
    %p43 = por %p41, %p42
    %p44 = scmp.ne.s32.totalorder %s36, %s39
    %p45 = scmp.eq.s32.totalorder %s12, 0
    %p46 = por %p44, %p45
    %p47 = scmp.ne.s32.totalorder %s36, %s39
    %p48 = scmp.eq.s32.totalorder %s17, 1
    %p49 = por %p47, %p48
    %p50 = scmp.ne.s32.totalorder %s39, %s40
    %p51 = scmp.eq.s32.totalorder %s17, 0
    %p52 = por %p50, %p51
    %p53 = scmp.ne.s32.totalorder %s39, %s40
    %p54 = scmp.eq.s32.totalorder %s18, 1
    %p55 = por %p53, %p54
    %p57 = scmp.ne.s32.totalorder %s40, %s56
    %p58 = scmp.eq.s32.totalorder %s18, 0
    %p59 = por %p57, %p58
    %s60 = ssub.s32 %s19, %s31
    %p61 = scmp.eq.s32.totalorder %s60, 0
    %s63 = sadd.s32 %s62, 1
    %s64 = scalar_select %p61, %s62, %s63
    %p67 = pneg %p61
    %p68 = scmp.eq.s32.totalorder %s12, 1
    %p69 = por %p67, %p68
    %p70 = scmp.ne.s32.totalorder %s62, %s65
    %p71 = scmp.eq.s32.totalorder %s12, 0
    %p72 = por %p70, %p71
    %p73 = scmp.ne.s32.totalorder %s62, %s65
    %p74 = scmp.eq.s32.totalorder %s17, 1
    %p75 = por %p73, %p74
    %p76 = scmp.ne.s32.totalorder %s65, %s66
    %p77 = scmp.eq.s32.totalorder %s17, 0
    %p78 = por %p76, %p77
    %p79 = scmp.ne.s32.totalorder %s65, %s66
    %p80 = scmp.eq.s32.totalorder %s18, 1
    %p81 = por %p79, %p80
    %p83 = scmp.ne.s32.totalorder %s66, %s82
    %p84 = scmp.eq.s32.totalorder %s18, 0
    %p85 = por %p83, %p84
    %s86 = ssub.s32 %s19, %s31
    %s87 = ssub.s32 %s20, %s27
    %s88 = sor.u32 %s86, %s87
    %p89 = scmp.eq.s32.totalorder %s88, 0
    %s91 = sadd.s32 %s90, 1
    %s92 = scalar_select %p89, %s90, %s91
    %p95 = pneg %p89
    %p96 = scmp.eq.s32.totalorder %s12, 1
    %p97 = por %p95, %p96
    %p98 = scmp.ne.s32.totalorder %s90, %s93
    %p99 = scmp.eq.s32.totalorder %s12, 0
    %p100 = por %p98, %p99
    %p101 = scmp.ne.s32.totalorder %s90, %s93
    %p102 = scmp.eq.s32.totalorder %s17, 1
    %p103 = por %p101, %p102
    %p104 = scmp.ne.s32.totalorder %s93, %s94
    %p105 = scmp.eq.s32.totalorder %s17, 0
    %p106 = por %p104, %p105
    %p107 = scmp.ne.s32.totalorder %s93, %s94
    %p108 = scmp.eq.s32.totalorder %s18, 1
    %p109 = por %p107, %p108
    %p111 = scmp.ne.s32.totalorder %s94, %s110
    %p112 = scmp.eq.s32.totalorder %s18, 0
    %p113 = por %p111, %p112
    %s114 = ssub.s32 %s19, %s31
    %s115 = ssub.s32 %s20, %s27
    %s116 = sor.u32 %s114, %s115
    %p117 = scmp.eq.s32.totalorder %s116, 0
    %s119 = sadd.s32 %s118, 1
    %s120 = scalar_select %p117, %s118, %s119
    %p123 = pneg %p117
    %p124 = scmp.eq.s32.totalorder %s12, 1
    %p125 = por %p123, %p124
    %p126 = scmp.ne.s32.totalorder %s118, %s121
    %p127 = scmp.eq.s32.totalorder %s12, 0
    %p128 = por %p126, %p127
    %p129 = scmp.ne.s32.totalorder %s118, %s121
    %p130 = scmp.eq.s32.totalorder %s17, 1
    %p131 = por %p129, %p130
    %p132 = scmp.ne.s32.totalorder %s121, %s122
    %p133 = scmp.eq.s32.totalorder %s17, 0
    %p134 = por %p132, %p133
    %p135 = scmp.ne.s32.totalorder %s121, %s122
    %p136 = scmp.eq.s32.totalorder %s18, 1
    %p137 = por %p135, %p136
    %p139 = scmp.ne.s32.totalorder %s122, %s138
    %p140 = scmp.eq.s32.totalorder %s18, 0
    %p141 = por %p139, %p140
    %s143 = sadd.s32 %s142, 1
    %p146 = scmp.eq.s32.totalorder %s12, 1
    %p147 = scmp.ne.s32.totalorder %s142, %s144
    %p148 = scmp.eq.s32.totalorder %s12, 0
    %p149 = por %p147, %p148
    %p150 = scmp.ne.s32.totalorder %s142, %s144
    %p151 = scmp.eq.s32.totalorder %s17, 1
    %p152 = por %p150, %p151
    %p153 = scmp.ne.s32.totalorder %s144, %s145
    %p154 = scmp.eq.s32.totalorder %s17, 0
    %p155 = por %p153, %p154
    %p156 = scmp.ne.s32.totalorder %s144, %s145
    %p157 = scmp.eq.s32.totalorder %s18, 1
    %p158 = por %p156, %p157
    %p160 = scmp.ne.s32.totalorder %s145, %s159
    %p161 = scmp.eq.s32.totalorder %s18, 0
    %p162 = por %p160, %p161
    %s164 = sadd.s32 %s163, 1
    %p167 = scmp.eq.s32.totalorder %s12, 1
    %p168 = scmp.ne.s32.totalorder %s163, %s165
    %p169 = scmp.eq.s32.totalorder %s12, 0
    %p170 = por %p168, %p169
    %p171 = scmp.ne.s32.totalorder %s163, %s165
    %p172 = scmp.eq.s32.totalorder %s17, 1
    %p173 = por %p171, %p172
    %p174 = scmp.ne.s32.totalorder %s165, %s166
    %p175 = scmp.eq.s32.totalorder %s17, 0
    %p176 = por %p174, %p175
    %p177 = scmp.ne.s32.totalorder %s165, %s166
    %p178 = scmp.eq.s32.totalorder %s18, 1
    %p179 = por %p177, %p178
    %p181 = scmp.ne.s32.totalorder %s166, %s180
    %p182 = scmp.eq.s32.totalorder %s18, 0
    %p183 = por %p181, %p182
    %s184 = ssub.s32 %s19, %s31
    %s185 = ssub.s32 %s20, %s27
    %s186 = sor.u32 %s184, %s185
    %p187 = scmp.eq.s32.totalorder %s186, 0
    %s189 = sadd.s32 %s188, 1
    %s190 = scalar_select %p187, %s188, %s189
    %p193 = pneg %p187
    %p194 = scmp.eq.s32.totalorder %s12, 1
    %p195 = por %p193, %p194
    %p196 = scmp.ne.s32.totalorder %s188, %s191
    %p197 = scmp.eq.s32.totalorder %s12, 0
    %p198 = por %p196, %p197
    %p199 = scmp.ne.s32.totalorder %s188, %s191
    %p200 = scmp.eq.s32.totalorder %s17, 1
    %p201 = por %p199, %p200
    %p202 = scmp.ne.s32.totalorder %s191, %s192
    %p203 = scmp.eq.s32.totalorder %s17, 0
    %p204 = por %p202, %p203
    %p205 = scmp.ne.s32.totalorder %s191, %s192
    %p206 = scmp.eq.s32.totalorder %s18, 1
    %p207 = por %p205, %p206
    %p209 = scmp.ne.s32.totalorder %s192, %s208
    %p210 = scmp.eq.s32.totalorder %s18, 0
    %p211 = por %p209, %p210
    %p212 = scmp.le.s32.totalorder 1, %s12
    %p213 = scmp.lt.s32.totalorder %s12, 3
    %p214 = pnand %p212, %p213
    %p215 = pneg %p214
    // Predicated region
    $region9: #{tpu_custom_call.1} parent=5 // pred_check
      _
    $region10: #{tpu_custom_call.1} parent=5 // pred_check_branch
      %217 = sbr.rel (%p214) target = $region12
    $region11: #{tpu_custom_call.1} parent=5 // pred_region
      %s218 = ssub.s32 %s12, 1
      // Predicated region
      $region13: #{tpu_custom_call.1} parent=11 // pred_check
        %p219 = pneg %p155
      $region14: #{tpu_custom_call.1} parent=11 // pred_check_branch
        %221 = sbr.rel (%p219) target = $region16
      $region15: #{tpu_custom_call.1} parent=11 // pred_region
        _
      $region16: #{tpu_custom_call.1} parent=11 // pred_fallthru
        _
      // Predicated region
      $region17: #{tpu_custom_call.1} parent=11 // pred_check
        %p222 = pneg %p176
      $region18: #{tpu_custom_call.1} parent=11 // pred_check_branch
        %224 = sbr.rel (%p222) target = $region20
      $region19: #{tpu_custom_call.1} parent=11 // pred_region
        _
      $region20: #{tpu_custom_call.1} parent=11 // pred_fallthru
        _
    $region12: #{tpu_custom_call.1} parent=5 // pred_fallthru
      _
    %p225 = scmp.lt.s32.totalorder %s12, 2
    // Predicated region
    $region21: #{tpu_custom_call.1} parent=5 // pred_check
      %p226 = pneg %p225
    $region22: #{tpu_custom_call.1} parent=5 // pred_check_branch
      %228 = sbr.rel (%p226) target = $region24
    $region23: #{tpu_custom_call.1} parent=5 // pred_region
      // Predicated region
      $region25: #{tpu_custom_call.1} parent=23 // pred_check
        %p229 = pneg %p46
      $region26: #{tpu_custom_call.1} parent=23 // pred_check_branch
        %231 = sbr.rel (%p229) target = $region28
      $region27: #{tpu_custom_call.1} parent=23 // pred_region
        %s232 = smul.u32 2, %s20
        %p233 = scmp.lt.s32.totalorder %s19, 1
        %s234 = scalar_select %p233, %s19, 1
        %p235 = scmp.lt.s32.totalorder %s232, 1
        %s236 = scalar_select %p235, %s232, 1
        %s237 = smul.addr %s234, 16
        %s238 = sadd.s32 %s236, %s237
        %s239 = smul.addr %s238, 8
        %s240 = scalar_lea.vmem %s0, %s239
        %s241 = smul.u32 2, %s20
      $region28: #{tpu_custom_call.1} parent=23 // pred_fallthru
        _
      // Predicated region
      $region29: #{tpu_custom_call.1} parent=23 // pred_check
        %p242 = pneg %p72
      $region30: #{tpu_custom_call.1} parent=23 // pred_check_branch
        %244 = sbr.rel (%p242) target = $region32
      $region31: #{tpu_custom_call.1} parent=23 // pred_region
        %p245 = scmp.lt.s32.totalorder %s19, 1
        %s246 = scalar_select %p245, %s19, 1
        %s247 = smul.addr %s246, 2
        %s248 = smul.addr %s247, 8
        %s249 = scalar_lea.vmem %s1, %s248
      $region32: #{tpu_custom_call.1} parent=23 // pred_fallthru
        _
      // Predicated region
      $region33: #{tpu_custom_call.1} parent=23 // pred_check
        %p250 = pneg %p100
      $region34: #{tpu_custom_call.1} parent=23 // pred_check_branch
        %252 = sbr.rel (%p250) target = $region36
      $region35: #{tpu_custom_call.1} parent=23 // pred_region
        %s253 = smul.u32 2, %s20
        %p254 = scmp.lt.s32.totalorder %s19, 1
        %s255 = scalar_select %p254, %s19, 1
        %p256 = scmp.lt.s32.totalorder %s253, 1
        %s257 = scalar_select %p256, %s253, 1
        %s258 = smul.addr %s255, 2
        %s259 = sadd.s32 %s257, %s258
        %s260 = smul.addr %s259, 8
        %s261 = scalar_lea.vmem %s2, %s260
        %s262 = smul.u32 2, %s20
      $region36: #{tpu_custom_call.1} parent=23 // pred_fallthru
        _
      // Predicated region
      $region37: #{tpu_custom_call.1} parent=23 // pred_check
        %p263 = pneg %p128
      $region38: #{tpu_custom_call.1} parent=23 // pred_check_branch
        %265 = sbr.rel (%p263) target = $region40
      $region39: #{tpu_custom_call.1} parent=23 // pred_region
        %s266 = smul.u32 2, %s20
        %p267 = scmp.lt.s32.totalorder %s19, 1
        %s268 = scalar_select %p267, %s19, 1
        %p269 = scmp.lt.s32.totalorder %s266, 1
        %s270 = scalar_select %p269, %s266, 1
        %s271 = smul.addr %s268, 2
        %s272 = sadd.s32 %s270, %s271
        %s273 = smul.addr %s272, 8
        %s274 = scalar_lea.vmem %s3, %s273
        %s275 = smul.u32 2, %s20
      $region40: #{tpu_custom_call.1} parent=23 // pred_fallthru
        _
    $region24: #{tpu_custom_call.1} parent=5 // pred_fallthru
      _
    %p276 = scmp.le.s32.totalorder 1, %s12
    %p277 = scmp.lt.s32.totalorder %s12, 3
    %p278 = pnand %p276, %p277
    %p279 = pneg %p278
    // Predicated region
    $region41: #{tpu_custom_call.1} parent=5 // pred_check
      _
    $region42: #{tpu_custom_call.1} parent=5 // pred_check_branch
      %281 = sbr.rel (%p278) target = $region44
    $region43: #{tpu_custom_call.1} parent=5 // pred_region
      %s282 = ssub.s32 %s12, 1
      %s283 = smul.u32 2, %s22
      %p284 = scmp.lt.s32.totalorder %s21, 1
      %s285 = scalar_select %p284, %s21, 1
      %p286 = scmp.lt.s32.totalorder %s283, 1
      %s287 = scalar_select %p286, %s283, 1
      %s288 = smul.addr %s285, 16
      %s289 = sadd.s32 %s287, %s288
      %s290 = smul.addr %s289, 8
      %s291 = scalar_lea.vmem %s0, %s290
      %p292 = pneg %p52
      %p293 = pneg %p49
      %p294 = scmp.lt.s32.totalorder %s21, 1
      %s295 = scalar_select %p294, %s21, 1
      %s296 = smul.addr %s295, 2
      %s297 = smul.addr %s296, 8
      %s298 = scalar_lea.vmem %s1, %s297
      %p299 = pneg %p78
      %p300 = pneg %p75
      %s301 = smul.u32 2, %s22
      %p302 = scmp.lt.s32.totalorder %s21, 1
      %s303 = scalar_select %p302, %s21, 1
      %p304 = scmp.lt.s32.totalorder %s301, 1
      %s305 = scalar_select %p304, %s301, 1
      %s306 = smul.addr %s303, 2
      %s307 = sadd.s32 %s305, %s306
      %s308 = smul.addr %s307, 8
      %s309 = scalar_lea.vmem %s2, %s308
      %p310 = pneg %p106
      %p311 = pneg %p103
      %s312 = smul.u32 2, %s22
      %p313 = scmp.lt.s32.totalorder %s21, 1
      %s314 = scalar_select %p313, %s21, 1
      %p315 = scmp.lt.s32.totalorder %s312, 1
      %s316 = scalar_select %p315, %s312, 1
      %s317 = smul.addr %s314, 2
      %s318 = sadd.s32 %s316, %s317
      %s319 = smul.addr %s318, 8
      %s320 = scalar_lea.vmem %s3, %s319
      %p321 = pneg %p134
      %p322 = pneg %p131
      %p323 = pneg %p155
      %p324 = pneg %p152
      %p325 = pneg %p176
      %p326 = pneg %p173
      %p327 = pneg %p204
      %p328 = pneg %p201
      %s329 = smul.u32 2, %s22
      %p330 = scmp.lt.s32.totalorder %s21, 1
      %s331 = scalar_select %p330, %s21, 1
      %p332 = scmp.lt.s32.totalorder %s329, 1
      %s333 = scalar_select %p332, %s329, 1
      %s334 = smul.addr %s331, 2
      %s335 = sadd.s32 %s333, %s334
      %s336 = smul.addr %s335, 8
      %s337 = scalar_lea.vmem %s6, %s336
      %s338 = smul.u32 2, %s22
      %p339 = scmp.lt.s32.totalorder %s21, 1
      %s340 = scalar_select %p339, %s21, 1
      %p341 = scmp.lt.s32.totalorder %s338, 1
      %s342 = scalar_select %p341, %s338, 1
      %s343 = smul.addr %s340, 16
      %s344 = sadd.s32 %s342, %s343
      %s345 = smul.addr %s344, 8
      %s346 = scalar_lea.vmem %s0, %s345
      %s347 = smul.u32 2, %s22
      %p348 = scmp.lt.s32.totalorder %s21, 1
      %s349 = scalar_select %p348, %s21, 1
      %s350 = smul.addr %s349, 2
      %s351 = smul.addr %s350, 8
      %s352 = scalar_lea.vmem %s1, %s351
      %s353 = smul.u32 2, %s22
      %p354 = scmp.lt.s32.totalorder %s21, 1
      %s355 = scalar_select %p354, %s21, 1
      %p356 = scmp.lt.s32.totalorder %s353, 1
      %s357 = scalar_select %p356, %s353, 1
      %s358 = smul.addr %s355, 2
      %s359 = sadd.s32 %s357, %s358
      %s360 = smul.addr %s359, 8
      %s361 = scalar_lea.vmem %s2, %s360
      %s362 = smul.u32 2, %s22
      %s363 = smul.u32 2, %s22
      %p364 = scmp.lt.s32.totalorder %s21, 1
      %s365 = scalar_select %p364, %s21, 1
      %p366 = scmp.lt.s32.totalorder %s363, 1
      %s367 = scalar_select %p366, %s363, 1
      %s368 = smul.addr %s365, 2
      %s369 = sadd.s32 %s367, %s368
      %s370 = smul.addr %s369, 8
      %s371 = scalar_lea.vmem %s3, %s370
      %s372 = smul.u32 2, %s22
      %s373 = smul.u32 2, %s22
      %p374 = scmp.lt.s32.totalorder %s21, 1
      %s375 = scalar_select %p374, %s21, 1
      %p376 = scmp.lt.s32.totalorder %s373, 1
      %s377 = scalar_select %p376, %s373, 1
      %s378 = smul.addr %s375, 2
      %s379 = sadd.s32 %s377, %s378
      %s380 = smul.addr %s379, 8
      %s381 = scalar_lea.vmem %s6, %s380
      %s382 = smul.u32 2, %s22
      %v383 = vlaneseq
      %v384 = vand.u32 %v383, 127
      %v385 = vld [vmem:[%s361] sm:$0xff]
      %v386 = vld [vmem:[%s361 + $0x8] sm:$0xff]
      %v387 = vld [vmem:[%s4] sm:$0x7]
      %388 = vst [vmem:[#allocation2] sm:$0xff] -inf
      %389 = vst [vmem:[#allocation2 + $0x8] sm:$0xff] -inf
      %v390 = vld [vmem:[%s346] sm:$0xff]
      %v391 = vld [vmem:[%s346 + $0x8] sm:$0xff]
      %392 = vset.pattern.permute.xlu0 0
      %393 = vperm.xlu0 %392, %v390
      %v394 = vpop.permute.xlu0 %393
      %395 = vset.pattern.permute.xlu0 0
      %396 = vperm.xlu0 %395, %v391
      %v397 = vpop.permute.xlu0 %396
      %vm398 = vcmp.eq.s32.totalorder %v394, %v384
      %vm399 = vcmp.eq.s32.totalorder %v397, %v384
      %v400 = vsel %vm398, 1, 0
      %v401 = vsel %vm399, 1, 0
      %v402 = vcvt.s32.f32 %v400
      %v403 = vcvt.s32.f32 %v401
      %v404 = vld [vmem:[%s352] sm:$0xff]
      %v405 = vld [vmem:[%s352 + $0x8] sm:$0xff]
      %vm406 = vcmask 130048
      %v408 = vsel %vm406, %v402, 0
      %v411 = vsel %vm406, %v403, 0
      %413 = vmatprep.subr.mxu0 0.0
      %414 = vmatpush1.msra.mxu0 0.0
      %415 = vmatprep.subr.mxu0 0.0
      %416 = vmatpush1.msra.mxu0 0.0
      %417 = vmatprep.subr.mxu0 0.0
      %418 = vmatpush1.msra.mxu0 0.0
      %419 = vmatprep.subr.mxu0 0.0
      %420 = vmatpush1.msra.mxu0 0.0
      %421 = vmatprep.subr.mxu0 0.0
      %422 = vmatpush1.msra.mxu0 0.0
      %423 = vmatprep.subr.mxu0 0.0
      %424 = vmatpush1.msra.mxu0 0.0
      %425 = vmatprep.subr.mxu0 0.0
      %426 = vmatpush1.msra.mxu0 0.0
      %427 = vmatprep.subr.mxu0 0.0
      %428 = vmatpush1.msra.mxu0 0.0
      %429 = vmatprep.subr.mxu0 0.0
      %430 = vmatpush1.msra.mxu0 0.0
      %431 = vmatprep.subr.mxu0 0.0
      %432 = vmatpush1.msra.mxu0 0.0
      %433 = vmatprep.subr.mxu0 0.0
      %434 = vmatpush1.msra.mxu0 0.0
      %435 = vmatprep.subr.mxu0 0.0
      %436 = vmatpush1.msra.mxu0 0.0
      %437 = vmatprep.subr.mxu0 0.0
      %438 = vmatpush1.msra.mxu0 0.0
      %439 = vmatprep.subr.mxu0 0.0
      %440 = vmatpush1.msra.mxu0 0.0
      %441 = vmatprep.subr.mxu0 0.0
      %442 = vmatpush1.msra.mxu0 %v405
      %443 = vmatprep.subr.mxu0 0.0
      %444 = vmatpush1.msra.mxu0 %v404
      %445 = vmatprep.subr.mxu0 0.0
      %446 = vmatpush2.msra.mxu0 0.0
      %447 = vmatprep.subr.mxu0 0.0
      %448 = vmatpush2.msra.mxu0 0.0
      %449 = vmatprep.subr.mxu0 0.0
      %450 = vmatpush2.msra.mxu0 0.0
      %451 = vmatprep.subr.mxu0 0.0
      %452 = vmatpush2.msra.mxu0 0.0
      %453 = vmatprep.subr.mxu0 0.0
      %454 = vmatpush2.msra.mxu0 0.0
      %455 = vmatprep.subr.mxu0 0.0
      %456 = vmatpush2.msra.mxu0 0.0
      %457 = vmatprep.subr.mxu0 0.0
      %458 = vmatpush2.msra.mxu0 0.0
      %459 = vmatprep.subr.mxu0 0.0
      %460 = vmatpush2.msra.mxu0 0.0
      %461 = vmatprep.subr.mxu0 0.0
      %462 = vmatpush2.msra.mxu0 0.0
      %463 = vmatprep.subr.mxu0 0.0
      %464 = vmatpush2.msra.mxu0 0.0
      %465 = vmatprep.subr.mxu0 0.0
      %466 = vmatpush2.msra.mxu0 0.0
      %467 = vmatprep.subr.mxu0 0.0
      %468 = vmatpush2.msra.mxu0 0.0
      %469 = vmatprep.subr.mxu0 0.0
      %470 = vmatpush2.msra.mxu0 0.0
      %471 = vmatprep.subr.mxu0 0.0
      %472 = vmatpush2.msra.mxu0 0.0
      %473 = vmatprep.subr.mxu0 0.0
      %474 = vmatpush2.msra.mxu0 0.0
      %475 = vmatprep.subr.mxu0 0.0
      %476 = vmatpush2.msra.mxu0 0.0
      %477 = vmatprep.mubr.f32.mxu0 0.0
      %478 = vmatmul.mubr.f32.gmra.mxu0 %v408
      %v479 = vpop.f32.mrf.mxu0
      %v480 = vadd.f32 0.0, %v479
      %v481 = vpop.f32.mrf.mxu0
      %482 = vmatprep.mubr.f32.mxu0 0.0
      %483 = vmatmul.mubr.f32.gmra.mxu0 %v411
      %v484 = vpop.f32.mrf.mxu0
      %v485 = vadd.f32 0.0, %v484
      %v486 = vpop.f32.mrf.mxu0
      %487 = vdwg.mxu0
      %490 = vrot.lane.b32.xlu0 %v385, 24
      %v491 = vpop.permute.xlu0 %490
      %492 = vrot.lane.b32.xlu0 %v386, 24
      %v493 = vpop.permute.xlu0 %492
      %v496 = vsub.f32 %v480, %v491
      %v497 = vsub.f32 %v485, %v493
      %v498 = vmul.f32 %v496, %v496
      %v499 = vmul.f32 %v497, %v497
      %502 = vrot.lane.b32.xlu0 %v498, 104
      %v503 = vpop.permute.xlu0 %502
      %504 = vrot.lane.b32.xlu0 %v499, 104
      %v505 = vpop.permute.xlu0 %504
      %vm508 = vcmask 23552
      %v509 = vsel %vm508, %v503, 0.0
      %510 = vadd.xlane.f32.xlu0 %v509
      %v511 = vpop.xlane.xlu0 %510
      %v512 = vsel %vm508, %v505, 0.0
      %513 = vadd.xlane.f32.xlu0 %v512
      %v514 = vpop.xlane.xlu0 %513
      %v515 = vmax.f32 %v511, 1e-24
      %v516 = vmax.f32 %v514, 1e-24
      %v517 = vrsqrt.pop %v515
      %v518 = vrsqrt.pop %v516
      %v519 = vmul.f32 %v496, %v517
      %v520 = vmul.f32 %v497, %v518
      %522 = vset.pattern.permute.xlu0 24
      %523 = vperm.xlu0 %522, %v519
      %v524 = vpop.permute.xlu0 %523
      %527 = vset.pattern.permute.xlu0 24
      %528 = vperm.xlu0 %527, %v520
      %v529 = vpop.permute.xlu0 %528
      %v531 = vlaneseq
      %v532 = vshrl.u32 %v531, 7
      %v533 = vsub.s32 0, %v532
      %v534 = vrot.slane %v387, %v533
      %v535 = vmul.f32 %v524, %v534
      %v536 = vmul.f32 %v529, %v534
      %537 = vset.pattern.permute.xlu0 25
      %538 = vperm.xlu0 %537, %v519
      %v539 = vpop.permute.xlu0 %538
      %541 = vset.pattern.permute.xlu0 25
      %542 = vperm.xlu0 %541, %v520
      %v543 = vpop.permute.xlu0 %542
      %v545 = vlaneseq
      %v546 = vshrl.u32 %v545, 7
      %v547 = vsub.s32 1, %v546
      %v548 = vrot.slane %v387, %v547
      %v549 = vmul.f32 %v539, %v548
      %v550 = vmul.f32 %v543, %v548
      %v551 = vadd.f32 %v535, %v549
      %v552 = vadd.f32 %v536, %v550
      %553 = vset.pattern.permute.xlu0 26
      %554 = vperm.xlu0 %553, %v519
      %v555 = vpop.permute.xlu0 %554
      %557 = vset.pattern.permute.xlu0 26
      %558 = vperm.xlu0 %557, %v520
      %v559 = vpop.permute.xlu0 %558
      %v561 = vlaneseq
      %v562 = vshrl.u32 %v561, 7
      %v563 = vsub.s32 2, %v562
      %v564 = vrot.slane %v387, %v563
      %v565 = vmul.f32 %v555, %v564
      %v566 = vmul.f32 %v559, %v564
      %v567 = vadd.f32 %v551, %v565
      %v568 = vadd.f32 %v552, %v566
      %v569 = vmax.f32 %v567, 0.0
      %v570 = vmax.f32 %v568, 0.0
      %v571 = vld [vmem:[#allocation2] sm:$0xff]
      %v572 = vld [vmem:[#allocation2 + $0x8] sm:$0xff]
      %v573 = vmul.f32 %v569, %v480
      %v574 = vmul.f32 %v570, %v485
      %v575 = vmax.f32 %v571, %v573
      %v576 = vmax.f32 %v572, %v574
      %577 = vst [vmem:[#allocation2] sm:$0xff] %v575
      %578 = vst [vmem:[#allocation2 + $0x8] sm:$0xff] %v576
      %s579 = scalar_lea.vmem %s346, 16
      %v580 = vld [vmem:[%s579] sm:$0xff]
      %v581 = vld [vmem:[%s579 + $0x8] sm:$0xff]
      %582 = vset.pattern.permute.xlu0 0
      %583 = vperm.xlu0 %582, %v580
      %v584 = vpop.permute.xlu0 %583
      %585 = vset.pattern.permute.xlu0 0
      %586 = vperm.xlu0 %585, %v581
      %v587 = vpop.permute.xlu0 %586
      %vm588 = vcmp.eq.s32.totalorder %v584, %v384
      %vm589 = vcmp.eq.s32.totalorder %v587, %v384
      %v590 = vsel %vm588, 1, 0
      %v591 = vsel %vm589, 1, 0
      %v592 = vcvt.s32.f32 %v590
      %v593 = vcvt.s32.f32 %v591
      %v594 = vld [vmem:[%s352] sm:$0xff]
      %v595 = vld [vmem:[%s352 + $0x8] sm:$0xff]
      %v597 = vsel %vm406, %v592, 0
      %v600 = vsel %vm406, %v593, 0
      %602 = vmatprep.subr.mxu0 0.0
      %603 = vmatpush1.msra.mxu0 0.0
      %604 = vmatprep.subr.mxu0 0.0
      %605 = vmatpush1.msra.mxu0 0.0
      %606 = vmatprep.subr.mxu0 0.0
      %607 = vmatpush1.msra.mxu0 0.0
      %608 = vmatprep.subr.mxu0 0.0
      %609 = vmatpush1.msra.mxu0 0.0
      %610 = vmatprep.subr.mxu0 0.0
      %611 = vmatpush1.msra.mxu0 0.0
      %612 = vmatprep.subr.mxu0 0.0
      %613 = vmatpush1.msra.mxu0 0.0
      %614 = vmatprep.subr.mxu0 0.0
      %615 = vmatpush1.msra.mxu0 0.0
      %616 = vmatprep.subr.mxu0 0.0
      %617 = vmatpush1.msra.mxu0 0.0
      %618 = vmatprep.subr.mxu0 0.0
      %619 = vmatpush1.msra.mxu0 0.0
      %620 = vmatprep.subr.mxu0 0.0
      %621 = vmatpush1.msra.mxu0 0.0
      %622 = vmatprep.subr.mxu0 0.0
      %623 = vmatpush1.msra.mxu0 0.0
      %624 = vmatprep.subr.mxu0 0.0
      %625 = vmatpush1.msra.mxu0 0.0
      %626 = vmatprep.subr.mxu0 0.0
      %627 = vmatpush1.msra.mxu0 0.0
      %628 = vmatprep.subr.mxu0 0.0
      %629 = vmatpush1.msra.mxu0 0.0
      %630 = vmatprep.subr.mxu0 0.0
      %631 = vmatpush1.msra.mxu0 %v595
      %632 = vmatprep.subr.mxu0 0.0
      %633 = vmatpush1.msra.mxu0 %v594
      %634 = vmatprep.subr.mxu0 0.0
      %635 = vmatpush2.msra.mxu0 0.0
      %636 = vmatprep.subr.mxu0 0.0
      %637 = vmatpush2.msra.mxu0 0.0
      %638 = vmatprep.subr.mxu0 0.0
      %639 = vmatpush2.msra.mxu0 0.0
      %640 = vmatprep.subr.mxu0 0.0
      %641 = vmatpush2.msra.mxu0 0.0
      %642 = vmatprep.subr.mxu0 0.0
      %643 = vmatpush2.msra.mxu0 0.0
      %644 = vmatprep.subr.mxu0 0.0
      %645 = vmatpush2.msra.mxu0 0.0
      %646 = vmatprep.subr.mxu0 0.0
      %647 = vmatpush2.msra.mxu0 0.0
      %648 = vmatprep.subr.mxu0 0.0
      %649 = vmatpush2.msra.mxu0 0.0
      %650 = vmatprep.subr.mxu0 0.0
      %651 = vmatpush2.msra.mxu0 0.0
      %652 = vmatprep.subr.mxu0 0.0
      %653 = vmatpush2.msra.mxu0 0.0
      %654 = vmatprep.subr.mxu0 0.0
      %655 = vmatpush2.msra.mxu0 0.0
      %656 = vmatprep.subr.mxu0 0.0
      %657 = vmatpush2.msra.mxu0 0.0
      %658 = vmatprep.subr.mxu0 0.0
      %659 = vmatpush2.msra.mxu0 0.0
      %660 = vmatprep.subr.mxu0 0.0
      %661 = vmatpush2.msra.mxu0 0.0
      %662 = vmatprep.subr.mxu0 0.0
      %663 = vmatpush2.msra.mxu0 0.0
      %664 = vmatprep.subr.mxu0 0.0
      %665 = vmatpush2.msra.mxu0 0.0
      %666 = vmatprep.mubr.f32.mxu0 0.0
      %667 = vmatmul.mubr.f32.gmra.mxu0 %v597
      %v668 = vpop.f32.mrf.mxu0
      %v669 = vadd.f32 0.0, %v668
      %v670 = vpop.f32.mrf.mxu0
      %671 = vmatprep.mubr.f32.mxu0 0.0
      %672 = vmatmul.mubr.f32.gmra.mxu0 %v600
      %v673 = vpop.f32.mrf.mxu0
      %v674 = vadd.f32 0.0, %v673
      %v675 = vpop.f32.mrf.mxu0
      %676 = vdwg.mxu0
      %v677 = vsub.f32 %v669, %v491
      %v678 = vsub.f32 %v674, %v493
      %v679 = vmul.f32 %v677, %v677
      %v680 = vmul.f32 %v678, %v678
      %683 = vrot.lane.b32.xlu0 %v679, 104
      %v684 = vpop.permute.xlu0 %683
      %685 = vrot.lane.b32.xlu0 %v680, 104
      %v686 = vpop.permute.xlu0 %685
      %v689 = vsel %vm508, %v684, 0.0
      %690 = vadd.xlane.f32.xlu0 %v689
      %v691 = vpop.xlane.xlu0 %690
      %v692 = vsel %vm508, %v686, 0.0
      %693 = vadd.xlane.f32.xlu0 %v692
      %v694 = vpop.xlane.xlu0 %693
      %v695 = vmax.f32 %v691, 1e-24
      %v696 = vmax.f32 %v694, 1e-24
      %v697 = vrsqrt.pop %v695
      %v698 = vrsqrt.pop %v696
      %v699 = vmul.f32 %v677, %v697
      %v700 = vmul.f32 %v678, %v698
      %702 = vset.pattern.permute.xlu0 24
      %703 = vperm.xlu0 %702, %v699
      %v704 = vpop.permute.xlu0 %703
      %707 = vset.pattern.permute.xlu0 24
      %708 = vperm.xlu0 %707, %v700
      %v709 = vpop.permute.xlu0 %708
      %v711 = vmul.f32 %v704, %v534
      %v712 = vmul.f32 %v709, %v534
      %713 = vset.pattern.permute.xlu0 25
      %714 = vperm.xlu0 %713, %v699
      %v715 = vpop.permute.xlu0 %714
      %717 = vset.pattern.permute.xlu0 25
      %718 = vperm.xlu0 %717, %v700
      %v719 = vpop.permute.xlu0 %718
      %v721 = vmul.f32 %v715, %v548
      %v722 = vmul.f32 %v719, %v548
      %v723 = vadd.f32 %v711, %v721
      %v724 = vadd.f32 %v712, %v722
      %725 = vset.pattern.permute.xlu0 26
      %726 = vperm.xlu0 %725, %v699
      %v727 = vpop.permute.xlu0 %726
      %729 = vset.pattern.permute.xlu0 26
      %730 = vperm.xlu0 %729, %v700
      %v731 = vpop.permute.xlu0 %730
      %v733 = vmul.f32 %v727, %v564
      %v734 = vmul.f32 %v731, %v564
      %v735 = vadd.f32 %v723, %v733
      %v736 = vadd.f32 %v724, %v734
      %v737 = vmax.f32 %v735, 0.0
      %v738 = vmax.f32 %v736, 0.0
      %v739 = vld [vmem:[#allocation2] sm:$0xff]
      %v740 = vld [vmem:[#allocation2 + $0x8] sm:$0xff]
      %v741 = vmul.f32 %v737, %v669
      %v742 = vmul.f32 %v738, %v674
      %v743 = vmax.f32 %v739, %v741
      %v744 = vmax.f32 %v740, %v742
      %745 = vst [vmem:[#allocation2] sm:$0xff] %v743
      %746 = vst [vmem:[#allocation2 + $0x8] sm:$0xff] %v744
      %s747 = scalar_lea.vmem %s346, 32
      %v748 = vld [vmem:[%s747] sm:$0xff]
      %v749 = vld [vmem:[%s747 + $0x8] sm:$0xff]
      %750 = vset.pattern.permute.xlu0 0
      %751 = vperm.xlu0 %750, %v748
      %v752 = vpop.permute.xlu0 %751
      %753 = vset.pattern.permute.xlu0 0
      %754 = vperm.xlu0 %753, %v749
      %v755 = vpop.permute.xlu0 %754
      %vm756 = vcmp.eq.s32.totalorder %v752, %v384
      %vm757 = vcmp.eq.s32.totalorder %v755, %v384
      %v758 = vsel %vm756, 1, 0
      %v759 = vsel %vm757, 1, 0
      %v760 = vcvt.s32.f32 %v758
      %v761 = vcvt.s32.f32 %v759
      %v762 = vld [vmem:[%s352] sm:$0xff]
      %v763 = vld [vmem:[%s352 + $0x8] sm:$0xff]
      %v765 = vsel %vm406, %v760, 0
      %v768 = vsel %vm406, %v761, 0
      %770 = vmatprep.subr.mxu0 0.0
      %771 = vmatpush1.msra.mxu0 0.0
      %772 = vmatprep.subr.mxu0 0.0
      %773 = vmatpush1.msra.mxu0 0.0
      %774 = vmatprep.subr.mxu0 0.0
      %775 = vmatpush1.msra.mxu0 0.0
      %776 = vmatprep.subr.mxu0 0.0
      %777 = vmatpush1.msra.mxu0 0.0
      %778 = vmatprep.subr.mxu0 0.0
      %779 = vmatpush1.msra.mxu0 0.0
      %780 = vmatprep.subr.mxu0 0.0
      %781 = vmatpush1.msra.mxu0 0.0
      %782 = vmatprep.subr.mxu0 0.0
      %783 = vmatpush1.msra.mxu0 0.0
      %784 = vmatprep.subr.mxu0 0.0
      %785 = vmatpush1.msra.mxu0 0.0
      %786 = vmatprep.subr.mxu0 0.0
      %787 = vmatpush1.msra.mxu0 0.0
      %788 = vmatprep.subr.mxu0 0.0
      %789 = vmatpush1.msra.mxu0 0.0
      %790 = vmatprep.subr.mxu0 0.0
      %791 = vmatpush1.msra.mxu0 0.0
      %792 = vmatprep.subr.mxu0 0.0
      %793 = vmatpush1.msra.mxu0 0.0
      %794 = vmatprep.subr.mxu0 0.0
      %795 = vmatpush1.msra.mxu0 0.0
      %796 = vmatprep.subr.mxu0 0.0
      %797 = vmatpush1.msra.mxu0 0.0
      %798 = vmatprep.subr.mxu0 0.0
      %799 = vmatpush1.msra.mxu0 %v763
      %800 = vmatprep.subr.mxu0 0.0
      %801 = vmatpush1.msra.mxu0 %v762
      %802 = vmatprep.subr.mxu0 0.0
      %803 = vmatpush2.msra.mxu0 0.0
      %804 = vmatprep.subr.mxu0 0.0
      %805 = vmatpush2.msra.mxu0 0.0
      %806 = vmatprep.subr.mxu0 0.0
      %807 = vmatpush2.msra.mxu0 0.0
      %808 = vmatprep.subr.mxu0 0.0
      %809 = vmatpush2.msra.mxu0 0.0
      %810 = vmatprep.subr.mxu0 0.0
      %811 = vmatpush2.msra.mxu0 0.0
      %812 = vmatprep.subr.mxu0 0.0
      %813 = vmatpush2.msra.mxu0 0.0
      %814 = vmatprep.subr.mxu0 0.0
      %815 = vmatpush2.msra.mxu0 0.0
      %816 = vmatprep.subr.mxu0 0.0
      %817 = vmatpush2.msra.mxu0 0.0
      %818 = vmatprep.subr.mxu0 0.0
      %819 = vmatpush2.msra.mxu0 0.0
      %820 = vmatprep.subr.mxu0 0.0
      %821 = vmatpush2.msra.mxu0 0.0
      %822 = vmatprep.subr.mxu0 0.0
      %823 = vmatpush2.msra.mxu0 0.0
      %824 = vmatprep.subr.mxu0 0.0
      %825 = vmatpush2.msra.mxu0 0.0
      %826 = vmatprep.subr.mxu0 0.0
      %827 = vmatpush2.msra.mxu0 0.0
      %828 = vmatprep.subr.mxu0 0.0
      %829 = vmatpush2.msra.mxu0 0.0
      %830 = vmatprep.subr.mxu0 0.0
      %831 = vmatpush2.msra.mxu0 0.0
      %832 = vmatprep.subr.mxu0 0.0
      %833 = vmatpush2.msra.mxu0 0.0
      %834 = vmatprep.mubr.f32.mxu0 0.0
      %835 = vmatmul.mubr.f32.gmra.mxu0 %v765
      %v836 = vpop.f32.mrf.mxu0
      %v837 = vadd.f32 0.0, %v836
      %v838 = vpop.f32.mrf.mxu0
      %839 = vmatprep.mubr.f32.mxu0 0.0
      %840 = vmatmul.mubr.f32.gmra.mxu0 %v768
      %v841 = vpop.f32.mrf.mxu0
      %v842 = vadd.f32 0.0, %v841
      %v843 = vpop.f32.mrf.mxu0
      %844 = vdwg.mxu0
      %v845 = vsub.f32 %v837, %v491
      %v846 = vsub.f32 %v842, %v493
      %v847 = vmul.f32 %v845, %v845
      %v848 = vmul.f32 %v846, %v846
      %851 = vrot.lane.b32.xlu0 %v847, 104
      %v852 = vpop.permute.xlu0 %851
      %853 = vrot.lane.b32.xlu0 %v848, 104
      %v854 = vpop.permute.xlu0 %853
      %v857 = vsel %vm508, %v852, 0.0
      %858 = vadd.xlane.f32.xlu0 %v857
      %v859 = vpop.xlane.xlu0 %858
      %v860 = vsel %vm508, %v854, 0.0
      %861 = vadd.xlane.f32.xlu0 %v860
      %v862 = vpop.xlane.xlu0 %861
      %v863 = vmax.f32 %v859, 1e-24
      %v864 = vmax.f32 %v862, 1e-24
      %v865 = vrsqrt.pop %v863
      %v866 = vrsqrt.pop %v864
      %v867 = vmul.f32 %v845, %v865
      %v868 = vmul.f32 %v846, %v866
      %870 = vset.pattern.permute.xlu0 24
      %871 = vperm.xlu0 %870, %v867
      %v872 = vpop.permute.xlu0 %871
      %875 = vset.pattern.permute.xlu0 24
      %876 = vperm.xlu0 %875, %v868
      %v877 = vpop.permute.xlu0 %876
      %v879 = vmul.f32 %v872, %v534
      %v880 = vmul.f32 %v877, %v534
      %881 = vset.pattern.permute.xlu0 25
      %882 = vperm.xlu0 %881, %v867
      %v883 = vpop.permute.xlu0 %882
      %885 = vset.pattern.permute.xlu0 25
      %886 = vperm.xlu0 %885, %v868
      %v887 = vpop.permute.xlu0 %886
      %v889 = vmul.f32 %v883, %v548
      %v890 = vmul.f32 %v887, %v548
      %v891 = vadd.f32 %v879, %v889
      %v892 = vadd.f32 %v880, %v890
      %893 = vset.pattern.permute.xlu0 26
      %894 = vperm.xlu0 %893, %v867
      %v895 = vpop.permute.xlu0 %894
      %897 = vset.pattern.permute.xlu0 26
      %898 = vperm.xlu0 %897, %v868
      %v899 = vpop.permute.xlu0 %898
      %v901 = vmul.f32 %v895, %v564
      %v902 = vmul.f32 %v899, %v564
      %v903 = vadd.f32 %v891, %v901
      %v904 = vadd.f32 %v892, %v902
      %v905 = vmax.f32 %v903, 0.0
      %v906 = vmax.f32 %v904, 0.0
      %v907 = vld [vmem:[#allocation2] sm:$0xff]
      %v908 = vld [vmem:[#allocation2 + $0x8] sm:$0xff]
      %v909 = vmul.f32 %v905, %v837
      %v910 = vmul.f32 %v906, %v842
      %v911 = vmax.f32 %v907, %v909
      %v912 = vmax.f32 %v908, %v910
      %913 = vst [vmem:[#allocation2] sm:$0xff] %v911
      %914 = vst [vmem:[#allocation2 + $0x8] sm:$0xff] %v912
      %s915 = scalar_lea.vmem %s346, 48
      %v916 = vld [vmem:[%s915] sm:$0xff]
      %v917 = vld [vmem:[%s915 + $0x8] sm:$0xff]
      %918 = vset.pattern.permute.xlu0 0
      %919 = vperm.xlu0 %918, %v916
      %v920 = vpop.permute.xlu0 %919
      %921 = vset.pattern.permute.xlu0 0
      %922 = vperm.xlu0 %921, %v917
      %v923 = vpop.permute.xlu0 %922
      %vm924 = vcmp.eq.s32.totalorder %v920, %v384
      %vm925 = vcmp.eq.s32.totalorder %v923, %v384
      %v926 = vsel %vm924, 1, 0
      %v927 = vsel %vm925, 1, 0
      %v928 = vcvt.s32.f32 %v926
      %v929 = vcvt.s32.f32 %v927
      %v930 = vld [vmem:[%s352] sm:$0xff]
      %v931 = vld [vmem:[%s352 + $0x8] sm:$0xff]
      %v933 = vsel %vm406, %v928, 0
      %v936 = vsel %vm406, %v929, 0
      %938 = vmatprep.subr.mxu0 0.0
      %939 = vmatpush1.msra.mxu0 0.0
      %940 = vmatprep.subr.mxu0 0.0
      %941 = vmatpush1.msra.mxu0 0.0
      %942 = vmatprep.subr.mxu0 0.0
      %943 = vmatpush1.msra.mxu0 0.0
      %944 = vmatprep.subr.mxu0 0.0
      %945 = vmatpush1.msra.mxu0 0.0
      %946 = vmatprep.subr.mxu0 0.0
      %947 = vmatpush1.msra.mxu0 0.0
      %948 = vmatprep.subr.mxu0 0.0
      %949 = vmatpush1.msra.mxu0 0.0
      %950 = vmatprep.subr.mxu0 0.0
      %951 = vmatpush1.msra.mxu0 0.0
      %952 = vmatprep.subr.mxu0 0.0
      %953 = vmatpush1.msra.mxu0 0.0
      %954 = vmatprep.subr.mxu0 0.0
      %955 = vmatpush1.msra.mxu0 0.0
      %956 = vmatprep.subr.mxu0 0.0
      %957 = vmatpush1.msra.mxu0 0.0
      %958 = vmatprep.subr.mxu0 0.0
      %959 = vmatpush1.msra.mxu0 0.0
      %960 = vmatprep.subr.mxu0 0.0
      %961 = vmatpush1.msra.mxu0 0.0
      %962 = vmatprep.subr.mxu0 0.0
      %963 = vmatpush1.msra.mxu0 0.0
      %964 = vmatprep.subr.mxu0 0.0
      %965 = vmatpush1.msra.mxu0 0.0
      %966 = vmatprep.subr.mxu0 0.0
      %967 = vmatpush1.msra.mxu0 %v931
      %968 = vmatprep.subr.mxu0 0.0
      %969 = vmatpush1.msra.mxu0 %v930
      %970 = vmatprep.subr.mxu0 0.0
      %971 = vmatpush2.msra.mxu0 0.0
      %972 = vmatprep.subr.mxu0 0.0
      %973 = vmatpush2.msra.mxu0 0.0
      %974 = vmatprep.subr.mxu0 0.0
      %975 = vmatpush2.msra.mxu0 0.0
      %976 = vmatprep.subr.mxu0 0.0
      %977 = vmatpush2.msra.mxu0 0.0
      %978 = vmatprep.subr.mxu0 0.0
      %979 = vmatpush2.msra.mxu0 0.0
      %980 = vmatprep.subr.mxu0 0.0
      %981 = vmatpush2.msra.mxu0 0.0
      %982 = vmatprep.subr.mxu0 0.0
      %983 = vmatpush2.msra.mxu0 0.0
      %984 = vmatprep.subr.mxu0 0.0
      %985 = vmatpush2.msra.mxu0 0.0
      %986 = vmatprep.subr.mxu0 0.0
      %987 = vmatpush2.msra.mxu0 0.0
      %988 = vmatprep.subr.mxu0 0.0
      %989 = vmatpush2.msra.mxu0 0.0
      %990 = vmatprep.subr.mxu0 0.0
      %991 = vmatpush2.msra.mxu0 0.0
      %992 = vmatprep.subr.mxu0 0.0
      %993 = vmatpush2.msra.mxu0 0.0
      %994 = vmatprep.subr.mxu0 0.0
      %995 = vmatpush2.msra.mxu0 0.0
      %996 = vmatprep.subr.mxu0 0.0
      %997 = vmatpush2.msra.mxu0 0.0
      %998 = vmatprep.subr.mxu0 0.0
      %999 = vmatpush2.msra.mxu0 0.0
      %1000 = vmatprep.subr.mxu0 0.0
      %1001 = vmatpush2.msra.mxu0 0.0
      %1002 = vmatprep.mubr.f32.mxu0 0.0
      %1003 = vmatmul.mubr.f32.gmra.mxu0 %v933
      %v1004 = vpop.f32.mrf.mxu0
      %v1005 = vadd.f32 0.0, %v1004
      %v1006 = vpop.f32.mrf.mxu0
      %1007 = vmatprep.mubr.f32.mxu0 0.0
      %1008 = vmatmul.mubr.f32.gmra.mxu0 %v936
      %v1009 = vpop.f32.mrf.mxu0
      %v1010 = vadd.f32 0.0, %v1009
      %v1011 = vpop.f32.mrf.mxu0
      %1012 = vdwg.mxu0
      %v1013 = vsub.f32 %v1005, %v491
      %v1014 = vsub.f32 %v1010, %v493
      %v1015 = vmul.f32 %v1013, %v1013
      %v1016 = vmul.f32 %v1014, %v1014
      %1019 = vrot.lane.b32.xlu0 %v1015, 104
      %v1020 = vpop.permute.xlu0 %1019
      %1021 = vrot.lane.b32.xlu0 %v1016, 104
      %v1022 = vpop.permute.xlu0 %1021
      %v1025 = vsel %vm508, %v1020, 0.0
      %1026 = vadd.xlane.f32.xlu0 %v1025
      %v1027 = vpop.xlane.xlu0 %1026
      %v1028 = vsel %vm508, %v1022, 0.0
      %1029 = vadd.xlane.f32.xlu0 %v1028
      %v1030 = vpop.xlane.xlu0 %1029
      %v1031 = vmax.f32 %v1027, 1e-24
      %v1032 = vmax.f32 %v1030, 1e-24
      %v1033 = vrsqrt.pop %v1031
      %v1034 = vrsqrt.pop %v1032
      %v1035 = vmul.f32 %v1013, %v1033
      %v1036 = vmul.f32 %v1014, %v1034
      %1038 = vset.pattern.permute.xlu0 24
      %1039 = vperm.xlu0 %1038, %v1035
      %v1040 = vpop.permute.xlu0 %1039
      %1043 = vset.pattern.permute.xlu0 24
      %1044 = vperm.xlu0 %1043, %v1036
      %v1045 = vpop.permute.xlu0 %1044
      %v1047 = vmul.f32 %v1040, %v534
      %v1048 = vmul.f32 %v1045, %v534
      %1049 = vset.pattern.permute.xlu0 25
      %1050 = vperm.xlu0 %1049, %v1035
      %v1051 = vpop.permute.xlu0 %1050
      %1053 = vset.pattern.permute.xlu0 25
      %1054 = vperm.xlu0 %1053, %v1036
      %v1055 = vpop.permute.xlu0 %1054
      %v1057 = vmul.f32 %v1051, %v548
      %v1058 = vmul.f32 %v1055, %v548
      %v1059 = vadd.f32 %v1047, %v1057
      %v1060 = vadd.f32 %v1048, %v1058
      %1061 = vset.pattern.permute.xlu0 26
      %1062 = vperm.xlu0 %1061, %v1035
      %v1063 = vpop.permute.xlu0 %1062
      %1065 = vset.pattern.permute.xlu0 26
      %1066 = vperm.xlu0 %1065, %v1036
      %v1067 = vpop.permute.xlu0 %1066
      %v1069 = vmul.f32 %v1063, %v564
      %v1070 = vmul.f32 %v1067, %v564
      %v1071 = vadd.f32 %v1059, %v1069
      %v1072 = vadd.f32 %v1060, %v1070
      %v1073 = vmax.f32 %v1071, 0.0
      %v1074 = vmax.f32 %v1072, 0.0
      %v1075 = vld [vmem:[#allocation2] sm:$0xff]
      %v1076 = vld [vmem:[#allocation2 + $0x8] sm:$0xff]
      %v1077 = vmul.f32 %v1073, %v1005
      %v1078 = vmul.f32 %v1074, %v1010
      %v1079 = vmax.f32 %v1075, %v1077
      %v1080 = vmax.f32 %v1076, %v1078
      %1081 = vst [vmem:[#allocation2] sm:$0xff] %v1079
      %1082 = vst [vmem:[#allocation2 + $0x8] sm:$0xff] %v1080
      %s1083 = scalar_lea.vmem %s346, 64
      %v1084 = vld [vmem:[%s1083] sm:$0xff]
      %v1085 = vld [vmem:[%s1083 + $0x8] sm:$0xff]
      %1086 = vset.pattern.permute.xlu0 0
      %1087 = vperm.xlu0 %1086, %v1084
      %v1088 = vpop.permute.xlu0 %1087
      %1089 = vset.pattern.permute.xlu0 0
      %1090 = vperm.xlu0 %1089, %v1085
      %v1091 = vpop.permute.xlu0 %1090
      %vm1092 = vcmp.eq.s32.totalorder %v1088, %v384
      %vm1093 = vcmp.eq.s32.totalorder %v1091, %v384
      %v1094 = vsel %vm1092, 1, 0
      %v1095 = vsel %vm1093, 1, 0
      %v1096 = vcvt.s32.f32 %v1094
      %v1097 = vcvt.s32.f32 %v1095
      %v1098 = vld [vmem:[%s352] sm:$0xff]
      %v1099 = vld [vmem:[%s352 + $0x8] sm:$0xff]
      %v1101 = vsel %vm406, %v1096, 0
      %v1104 = vsel %vm406, %v1097, 0
      %1106 = vmatprep.subr.mxu0 0.0
      %1107 = vmatpush1.msra.mxu0 0.0
      %1108 = vmatprep.subr.mxu0 0.0
      %1109 = vmatpush1.msra.mxu0 0.0
      %1110 = vmatprep.subr.mxu0 0.0
      %1111 = vmatpush1.msra.mxu0 0.0
      %1112 = vmatprep.subr.mxu0 0.0
      %1113 = vmatpush1.msra.mxu0 0.0
      %1114 = vmatprep.subr.mxu0 0.0
      %1115 = vmatpush1.msra.mxu0 0.0
      %1116 = vmatprep.subr.mxu0 0.0
      %1117 = vmatpush1.msra.mxu0 0.0
      %1118 = vmatprep.subr.mxu0 0.0
      %1119 = vmatpush1.msra.mxu0 0.0
      %1120 = vmatprep.subr.mxu0 0.0
      %1121 = vmatpush1.msra.mxu0 0.0
      %1122 = vmatprep.subr.mxu0 0.0
      %1123 = vmatpush1.msra.mxu0 0.0
      %1124 = vmatprep.subr.mxu0 0.0
      %1125 = vmatpush1.msra.mxu0 0.0
      %1126 = vmatprep.subr.mxu0 0.0
      %1127 = vmatpush1.msra.mxu0 0.0
      %1128 = vmatprep.subr.mxu0 0.0
      %1129 = vmatpush1.msra.mxu0 0.0
      %1130 = vmatprep.subr.mxu0 0.0
      %1131 = vmatpush1.msra.mxu0 0.0
      %1132 = vmatprep.subr.mxu0 0.0
      %1133 = vmatpush1.msra.mxu0 0.0
      %1134 = vmatprep.subr.mxu0 0.0
      %1135 = vmatpush1.msra.mxu0 %v1099
      %1136 = vmatprep.subr.mxu0 0.0
      %1137 = vmatpush1.msra.mxu0 %v1098
      %1138 = vmatprep.subr.mxu0 0.0
      %1139 = vmatpush2.msra.mxu0 0.0
      %1140 = vmatprep.subr.mxu0 0.0
      %1141 = vmatpush2.msra.mxu0 0.0
      %1142 = vmatprep.subr.mxu0 0.0
      %1143 = vmatpush2.msra.mxu0 0.0
      %1144 = vmatprep.subr.mxu0 0.0
      %1145 = vmatpush2.msra.mxu0 0.0
      %1146 = vmatprep.subr.mxu0 0.0
      %1147 = vmatpush2.msra.mxu0 0.0
      %1148 = vmatprep.subr.mxu0 0.0
      %1149 = vmatpush2.msra.mxu0 0.0
      %1150 = vmatprep.subr.mxu0 0.0
      %1151 = vmatpush2.msra.mxu0 0.0
      %1152 = vmatprep.subr.mxu0 0.0
      %1153 = vmatpush2.msra.mxu0 0.0
      %1154 = vmatprep.subr.mxu0 0.0
      %1155 = vmatpush2.msra.mxu0 0.0
      %1156 = vmatprep.subr.mxu0 0.0
      %1157 = vmatpush2.msra.mxu0 0.0
      %1158 = vmatprep.subr.mxu0 0.0
      %1159 = vmatpush2.msra.mxu0 0.0
      %1160 = vmatprep.subr.mxu0 0.0
      %1161 = vmatpush2.msra.mxu0 0.0
      %1162 = vmatprep.subr.mxu0 0.0
      %1163 = vmatpush2.msra.mxu0 0.0
      %1164 = vmatprep.subr.mxu0 0.0
      %1165 = vmatpush2.msra.mxu0 0.0
      %1166 = vmatprep.subr.mxu0 0.0
      %1167 = vmatpush2.msra.mxu0 0.0
      %1168 = vmatprep.subr.mxu0 0.0
      %1169 = vmatpush2.msra.mxu0 0.0
      %1170 = vmatprep.mubr.f32.mxu0 0.0
      %1171 = vmatmul.mubr.f32.gmra.mxu0 %v1101
      %v1172 = vpop.f32.mrf.mxu0
      %v1173 = vadd.f32 0.0, %v1172
      %v1174 = vpop.f32.mrf.mxu0
      %1175 = vmatprep.mubr.f32.mxu0 0.0
      %1176 = vmatmul.mubr.f32.gmra.mxu0 %v1104
      %v1177 = vpop.f32.mrf.mxu0
      %v1178 = vadd.f32 0.0, %v1177
      %v1179 = vpop.f32.mrf.mxu0
      %1180 = vdwg.mxu0
      %v1181 = vsub.f32 %v1173, %v491
      %v1182 = vsub.f32 %v1178, %v493
      %v1183 = vmul.f32 %v1181, %v1181
      %v1184 = vmul.f32 %v1182, %v1182
      %1187 = vrot.lane.b32.xlu0 %v1183, 104
      %v1188 = vpop.permute.xlu0 %1187
      %1189 = vrot.lane.b32.xlu0 %v1184, 104
      %v1190 = vpop.permute.xlu0 %1189
      %v1193 = vsel %vm508, %v1188, 0.0
      %1194 = vadd.xlane.f32.xlu0 %v1193
      %v1195 = vpop.xlane.xlu0 %1194
      %v1196 = vsel %vm508, %v1190, 0.0
      %1197 = vadd.xlane.f32.xlu0 %v1196
      %v1198 = vpop.xlane.xlu0 %1197
      %v1199 = vmax.f32 %v1195, 1e-24
      %v1200 = vmax.f32 %v1198, 1e-24
      %v1201 = vrsqrt.pop %v1199
      %v1202 = vrsqrt.pop %v1200
      %v1203 = vmul.f32 %v1181, %v1201
      %v1204 = vmul.f32 %v1182, %v1202
      %1206 = vset.pattern.permute.xlu0 24
      %1207 = vperm.xlu0 %1206, %v1203
      %v1208 = vpop.permute.xlu0 %1207
      %1211 = vset.pattern.permute.xlu0 24
      %1212 = vperm.xlu0 %1211, %v1204
      %v1213 = vpop.permute.xlu0 %1212
      %v1215 = vmul.f32 %v1208, %v534
      %v1216 = vmul.f32 %v1213, %v534
      %1217 = vset.pattern.permute.xlu0 25
      %1218 = vperm.xlu0 %1217, %v1203
      %v1219 = vpop.permute.xlu0 %1218
      %1221 = vset.pattern.permute.xlu0 25
      %1222 = vperm.xlu0 %1221, %v1204
      %v1223 = vpop.permute.xlu0 %1222
      %v1225 = vmul.f32 %v1219, %v548
      %v1226 = vmul.f32 %v1223, %v548
      %v1227 = vadd.f32 %v1215, %v1225
      %v1228 = vadd.f32 %v1216, %v1226
      %1229 = vset.pattern.permute.xlu0 26
      %1230 = vperm.xlu0 %1229, %v1203
      %v1231 = vpop.permute.xlu0 %1230
      %1233 = vset.pattern.permute.xlu0 26
      %1234 = vperm.xlu0 %1233, %v1204
      %v1235 = vpop.permute.xlu0 %1234
      %v1237 = vmul.f32 %v1231, %v564
      %v1238 = vmul.f32 %v1235, %v564
      %v1239 = vadd.f32 %v1227, %v1237
      %v1240 = vadd.f32 %v1228, %v1238
      %v1241 = vmax.f32 %v1239, 0.0
      %v1242 = vmax.f32 %v1240, 0.0
      %v1243 = vld [vmem:[#allocation2] sm:$0xff]
      %v1244 = vld [vmem:[#allocation2 + $0x8] sm:$0xff]
      %v1245 = vmul.f32 %v1241, %v1173
      %v1246 = vmul.f32 %v1242, %v1178
      %v1247 = vmax.f32 %v1243, %v1245
      %v1248 = vmax.f32 %v1244, %v1246
      %1249 = vst [vmem:[#allocation2] sm:$0xff] %v1247
      %1250 = vst [vmem:[#allocation2 + $0x8] sm:$0xff] %v1248
      %s1251 = scalar_lea.vmem %s346, 80
      %v1252 = vld [vmem:[%s1251] sm:$0xff]
      %v1253 = vld [vmem:[%s1251 + $0x8] sm:$0xff]
      %1254 = vset.pattern.permute.xlu0 0
      %1255 = vperm.xlu0 %1254, %v1252
      %v1256 = vpop.permute.xlu0 %1255
      %1257 = vset.pattern.permute.xlu0 0
      %1258 = vperm.xlu0 %1257, %v1253
      %v1259 = vpop.permute.xlu0 %1258
      %vm1260 = vcmp.eq.s32.totalorder %v1256, %v384
      %vm1261 = vcmp.eq.s32.totalorder %v1259, %v384
      %v1262 = vsel %vm1260, 1, 0
      %v1263 = vsel %vm1261, 1, 0
      %v1264 = vcvt.s32.f32 %v1262
      %v1265 = vcvt.s32.f32 %v1263
      %v1266 = vld [vmem:[%s352] sm:$0xff]
      %v1267 = vld [vmem:[%s352 + $0x8] sm:$0xff]
      %v1269 = vsel %vm406, %v1264, 0
      %v1272 = vsel %vm406, %v1265, 0
      %1274 = vmatprep.subr.mxu0 0.0
      %1275 = vmatpush1.msra.mxu0 0.0
      %1276 = vmatprep.subr.mxu0 0.0
      %1277 = vmatpush1.msra.mxu0 0.0
      %1278 = vmatprep.subr.mxu0 0.0
      %1279 = vmatpush1.msra.mxu0 0.0
      %1280 = vmatprep.subr.mxu0 0.0
      %1281 = vmatpush1.msra.mxu0 0.0
      %1282 = vmatprep.subr.mxu0 0.0
      %1283 = vmatpush1.msra.mxu0 0.0
      %1284 = vmatprep.subr.mxu0 0.0
      %1285 = vmatpush1.msra.mxu0 0.0
      %1286 = vmatprep.subr.mxu0 0.0
      %1287 = vmatpush1.msra.mxu0 0.0
      %1288 = vmatprep.subr.mxu0 0.0
      %1289 = vmatpush1.msra.mxu0 0.0
      %1290 = vmatprep.subr.mxu0 0.0
      %1291 = vmatpush1.msra.mxu0 0.0
      %1292 = vmatprep.subr.mxu0 0.0
      %1293 = vmatpush1.msra.mxu0 0.0
      %1294 = vmatprep.subr.mxu0 0.0
      %1295 = vmatpush1.msra.mxu0 0.0
      %1296 = vmatprep.subr.mxu0 0.0
      %1297 = vmatpush1.msra.mxu0 0.0
      %1298 = vmatprep.subr.mxu0 0.0
      %1299 = vmatpush1.msra.mxu0 0.0
      %1300 = vmatprep.subr.mxu0 0.0
      %1301 = vmatpush1.msra.mxu0 0.0
      %1302 = vmatprep.subr.mxu0 0.0
      %1303 = vmatpush1.msra.mxu0 %v1267
      %1304 = vmatprep.subr.mxu0 0.0
      %1305 = vmatpush1.msra.mxu0 %v1266
      %1306 = vmatprep.subr.mxu0 0.0
      %1307 = vmatpush2.msra.mxu0 0.0
      %1308 = vmatprep.subr.mxu0 0.0
      %1309 = vmatpush2.msra.mxu0 0.0
      %1310 = vmatprep.subr.mxu0 0.0
      %1311 = vmatpush2.msra.mxu0 0.0
      %1312 = vmatprep.subr.mxu0 0.0
      %1313 = vmatpush2.msra.mxu0 0.0
      %1314 = vmatprep.subr.mxu0 0.0
      %1315 = vmatpush2.msra.mxu0 0.0
      %1316 = vmatprep.subr.mxu0 0.0
      %1317 = vmatpush2.msra.mxu0 0.0
      %1318 = vmatprep.subr.mxu0 0.0
      %1319 = vmatpush2.msra.mxu0 0.0
      %1320 = vmatprep.subr.mxu0 0.0
      %1321 = vmatpush2.msra.mxu0 0.0
      %1322 = vmatprep.subr.mxu0 0.0
      %1323 = vmatpush2.msra.mxu0 0.0
      %1324 = vmatprep.subr.mxu0 0.0
      %1325 = vmatpush2.msra.mxu0 0.0
      %1326 = vmatprep.subr.mxu0 0.0
      %1327 = vmatpush2.msra.mxu0 0.0
      %1328 = vmatprep.subr.mxu0 0.0
      %1329 = vmatpush2.msra.mxu0 0.0
      %1330 = vmatprep.subr.mxu0 0.0
      %1331 = vmatpush2.msra.mxu0 0.0
      %1332 = vmatprep.subr.mxu0 0.0
      %1333 = vmatpush2.msra.mxu0 0.0
      %1334 = vmatprep.subr.mxu0 0.0
      %1335 = vmatpush2.msra.mxu0 0.0
      %1336 = vmatprep.subr.mxu0 0.0
      %1337 = vmatpush2.msra.mxu0 0.0
      %1338 = vmatprep.mubr.f32.mxu0 0.0
      %1339 = vmatmul.mubr.f32.gmra.mxu0 %v1269
      %v1340 = vpop.f32.mrf.mxu0
      %v1341 = vadd.f32 0.0, %v1340
      %v1342 = vpop.f32.mrf.mxu0
      %1343 = vmatprep.mubr.f32.mxu0 0.0
      %1344 = vmatmul.mubr.f32.gmra.mxu0 %v1272
      %v1345 = vpop.f32.mrf.mxu0
      %v1346 = vadd.f32 0.0, %v1345
      %v1347 = vpop.f32.mrf.mxu0
      %1348 = vdwg.mxu0
      %v1349 = vsub.f32 %v1341, %v491
      %v1350 = vsub.f32 %v1346, %v493
      %v1351 = vmul.f32 %v1349, %v1349
      %v1352 = vmul.f32 %v1350, %v1350
      %1355 = vrot.lane.b32.xlu0 %v1351, 104
      %v1356 = vpop.permute.xlu0 %1355
      %1357 = vrot.lane.b32.xlu0 %v1352, 104
      %v1358 = vpop.permute.xlu0 %1357
      %v1361 = vsel %vm508, %v1356, 0.0
      %1362 = vadd.xlane.f32.xlu0 %v1361
      %v1363 = vpop.xlane.xlu0 %1362
      %v1364 = vsel %vm508, %v1358, 0.0
      %1365 = vadd.xlane.f32.xlu0 %v1364
      %v1366 = vpop.xlane.xlu0 %1365
      %v1367 = vmax.f32 %v1363, 1e-24
      %v1368 = vmax.f32 %v1366, 1e-24
      %v1369 = vrsqrt.pop %v1367
      %v1370 = vrsqrt.pop %v1368
      %v1371 = vmul.f32 %v1349, %v1369
      %v1372 = vmul.f32 %v1350, %v1370
      %1374 = vset.pattern.permute.xlu0 24
      %1375 = vperm.xlu0 %1374, %v1371
      %v1376 = vpop.permute.xlu0 %1375
      %1379 = vset.pattern.permute.xlu0 24
      %1380 = vperm.xlu0 %1379, %v1372
      %v1381 = vpop.permute.xlu0 %1380
      %v1383 = vmul.f32 %v1376, %v534
      %v1384 = vmul.f32 %v1381, %v534
      %1385 = vset.pattern.permute.xlu0 25
      %1386 = vperm.xlu0 %1385, %v1371
      %v1387 = vpop.permute.xlu0 %1386
      %1389 = vset.pattern.permute.xlu0 25
      %1390 = vperm.xlu0 %1389, %v1372
      %v1391 = vpop.permute.xlu0 %1390
      %v1393 = vmul.f32 %v1387, %v548
      %v1394 = vmul.f32 %v1391, %v548
      %v1395 = vadd.f32 %v1383, %v1393
      %v1396 = vadd.f32 %v1384, %v1394
      %1397 = vset.pattern.permute.xlu0 26
      %1398 = vperm.xlu0 %1397, %v1371
      %v1399 = vpop.permute.xlu0 %1398
      %1401 = vset.pattern.permute.xlu0 26
      %1402 = vperm.xlu0 %1401, %v1372
      %v1403 = vpop.permute.xlu0 %1402
      %v1405 = vmul.f32 %v1399, %v564
      %v1406 = vmul.f32 %v1403, %v564
      %v1407 = vadd.f32 %v1395, %v1405
      %v1408 = vadd.f32 %v1396, %v1406
      %v1409 = vmax.f32 %v1407, 0.0
      %v1410 = vmax.f32 %v1408, 0.0
      %v1411 = vld [vmem:[#allocation2] sm:$0xff]
      %v1412 = vld [vmem:[#allocation2 + $0x8] sm:$0xff]
      %v1413 = vmul.f32 %v1409, %v1341
      %v1414 = vmul.f32 %v1410, %v1346
      %v1415 = vmax.f32 %v1411, %v1413
      %v1416 = vmax.f32 %v1412, %v1414
      %1417 = vst [vmem:[#allocation2] sm:$0xff] %v1415
      %1418 = vst [vmem:[#allocation2 + $0x8] sm:$0xff] %v1416
      %s1419 = scalar_lea.vmem %s346, 96
      %v1420 = vld [vmem:[%s1419] sm:$0xff]
      %v1421 = vld [vmem:[%s1419 + $0x8] sm:$0xff]
      %1422 = vset.pattern.permute.xlu0 0
      %1423 = vperm.xlu0 %1422, %v1420
      %v1424 = vpop.permute.xlu0 %1423
      %1425 = vset.pattern.permute.xlu0 0
      %1426 = vperm.xlu0 %1425, %v1421
      %v1427 = vpop.permute.xlu0 %1426
      %vm1428 = vcmp.eq.s32.totalorder %v1424, %v384
      %vm1429 = vcmp.eq.s32.totalorder %v1427, %v384
      %v1430 = vsel %vm1428, 1, 0
      %v1431 = vsel %vm1429, 1, 0
      %v1432 = vcvt.s32.f32 %v1430
      %v1433 = vcvt.s32.f32 %v1431
      %v1434 = vld [vmem:[%s352] sm:$0xff]
      %v1435 = vld [vmem:[%s352 + $0x8] sm:$0xff]
      %v1437 = vsel %vm406, %v1432, 0
      %v1440 = vsel %vm406, %v1433, 0
      %1442 = vmatprep.subr.mxu0 0.0
      %1443 = vmatpush1.msra.mxu0 0.0
      %1444 = vmatprep.subr.mxu0 0.0
      %1445 = vmatpush1.msra.mxu0 0.0
      %1446 = vmatprep.subr.mxu0 0.0
      %1447 = vmatpush1.msra.mxu0 0.0
      %1448 = vmatprep.subr.mxu0 0.0
      %1449 = vmatpush1.msra.mxu0 0.0
      %1450 = vmatprep.subr.mxu0 0.0
      %1451 = vmatpush1.msra.mxu0 0.0
      %1452 = vmatprep.subr.mxu0 0.0
      %1453 = vmatpush1.msra.mxu0 0.0
      %1454 = vmatprep.subr.mxu0 0.0
      %1455 = vmatpush1.msra.mxu0 0.0
      %1456 = vmatprep.subr.mxu0 0.0
      %1457 = vmatpush1.msra.mxu0 0.0
      %1458 = vmatprep.subr.mxu0 0.0
      %1459 = vmatpush1.msra.mxu0 0.0
      %1460 = vmatprep.subr.mxu0 0.0
      %1461 = vmatpush1.msra.mxu0 0.0
      %1462 = vmatprep.subr.mxu0 0.0
      %1463 = vmatpush1.msra.mxu0 0.0
      %1464 = vmatprep.subr.mxu0 0.0
      %1465 = vmatpush1.msra.mxu0 0.0
      %1466 = vmatprep.subr.mxu0 0.0
      %1467 = vmatpush1.msra.mxu0 0.0
      %1468 = vmatprep.subr.mxu0 0.0
      %1469 = vmatpush1.msra.mxu0 0.0
      %1470 = vmatprep.subr.mxu0 0.0
      %1471 = vmatpush1.msra.mxu0 %v1435
      %1472 = vmatprep.subr.mxu0 0.0
      %1473 = vmatpush1.msra.mxu0 %v1434
      %1474 = vmatprep.subr.mxu0 0.0
      %1475 = vmatpush2.msra.mxu0 0.0
      %1476 = vmatprep.subr.mxu0 0.0
      %1477 = vmatpush2.msra.mxu0 0.0
      %1478 = vmatprep.subr.mxu0 0.0
      %1479 = vmatpush2.msra.mxu0 0.0
      %1480 = vmatprep.subr.mxu0 0.0
      %1481 = vmatpush2.msra.mxu0 0.0
      %1482 = vmatprep.subr.mxu0 0.0
      %1483 = vmatpush2.msra.mxu0 0.0
      %1484 = vmatprep.subr.mxu0 0.0
      %1485 = vmatpush2.msra.mxu0 0.0
      %1486 = vmatprep.subr.mxu0 0.0
      %1487 = vmatpush2.msra.mxu0 0.0
      %1488 = vmatprep.subr.mxu0 0.0
      %1489 = vmatpush2.msra.mxu0 0.0
      %1490 = vmatprep.subr.mxu0 0.0
      %1491 = vmatpush2.msra.mxu0 0.0
      %1492 = vmatprep.subr.mxu0 0.0
      %1493 = vmatpush2.msra.mxu0 0.0
      %1494 = vmatprep.subr.mxu0 0.0
      %1495 = vmatpush2.msra.mxu0 0.0
      %1496 = vmatprep.subr.mxu0 0.0
      %1497 = vmatpush2.msra.mxu0 0.0
      %1498 = vmatprep.subr.mxu0 0.0
      %1499 = vmatpush2.msra.mxu0 0.0
      %1500 = vmatprep.subr.mxu0 0.0
      %1501 = vmatpush2.msra.mxu0 0.0
      %1502 = vmatprep.subr.mxu0 0.0
      %1503 = vmatpush2.msra.mxu0 0.0
      %1504 = vmatprep.subr.mxu0 0.0
      %1505 = vmatpush2.msra.mxu0 0.0
      %1506 = vmatprep.mubr.f32.mxu0 0.0
      %1507 = vmatmul.mubr.f32.gmra.mxu0 %v1437
      %v1508 = vpop.f32.mrf.mxu0
      %v1509 = vadd.f32 0.0, %v1508
      %v1510 = vpop.f32.mrf.mxu0
      %1511 = vmatprep.mubr.f32.mxu0 0.0
      %1512 = vmatmul.mubr.f32.gmra.mxu0 %v1440
      %v1513 = vpop.f32.mrf.mxu0
      %v1514 = vadd.f32 0.0, %v1513
      %v1515 = vpop.f32.mrf.mxu0
      %1516 = vdwg.mxu0
      %v1517 = vsub.f32 %v1509, %v491
      %v1518 = vsub.f32 %v1514, %v493
      %v1519 = vmul.f32 %v1517, %v1517
      %v1520 = vmul.f32 %v1518, %v1518
      %1523 = vrot.lane.b32.xlu0 %v1519, 104
      %v1524 = vpop.permute.xlu0 %1523
      %1525 = vrot.lane.b32.xlu0 %v1520, 104
      %v1526 = vpop.permute.xlu0 %1525
      %v1529 = vsel %vm508, %v1524, 0.0
      %1530 = vadd.xlane.f32.xlu0 %v1529
      %v1531 = vpop.xlane.xlu0 %1530
      %v1532 = vsel %vm508, %v1526, 0.0
      %1533 = vadd.xlane.f32.xlu0 %v1532
      %v1534 = vpop.xlane.xlu0 %1533
      %v1535 = vmax.f32 %v1531, 1e-24
      %v1536 = vmax.f32 %v1534, 1e-24
      %v1537 = vrsqrt.pop %v1535
      %v1538 = vrsqrt.pop %v1536
      %v1539 = vmul.f32 %v1517, %v1537
      %v1540 = vmul.f32 %v1518, %v1538
      %1542 = vset.pattern.permute.xlu0 24
      %1543 = vperm.xlu0 %1542, %v1539
      %v1544 = vpop.permute.xlu0 %1543
      %1547 = vset.pattern.permute.xlu0 24
      %1548 = vperm.xlu0 %1547, %v1540
      %v1549 = vpop.permute.xlu0 %1548
      %v1551 = vmul.f32 %v1544, %v534
      %v1552 = vmul.f32 %v1549, %v534
      %1553 = vset.pattern.permute.xlu0 25
      %1554 = vperm.xlu0 %1553, %v1539
      %v1555 = vpop.permute.xlu0 %1554
      %1557 = vset.pattern.permute.xlu0 25
      %1558 = vperm.xlu0 %1557, %v1540
      %v1559 = vpop.permute.xlu0 %1558
      %v1561 = vmul.f32 %v1555, %v548
      %v1562 = vmul.f32 %v1559, %v548
      %v1563 = vadd.f32 %v1551, %v1561
      %v1564 = vadd.f32 %v1552, %v1562
      %1565 = vset.pattern.permute.xlu0 26
      %1566 = vperm.xlu0 %1565, %v1539
      %v1567 = vpop.permute.xlu0 %1566
      %1569 = vset.pattern.permute.xlu0 26
      %1570 = vperm.xlu0 %1569, %v1540
      %v1571 = vpop.permute.xlu0 %1570
      %v1573 = vmul.f32 %v1567, %v564
      %v1574 = vmul.f32 %v1571, %v564
      %v1575 = vadd.f32 %v1563, %v1573
      %v1576 = vadd.f32 %v1564, %v1574
      %v1577 = vmax.f32 %v1575, 0.0
      %v1578 = vmax.f32 %v1576, 0.0
      %v1579 = vld [vmem:[#allocation2] sm:$0xff]
      %v1580 = vld [vmem:[#allocation2 + $0x8] sm:$0xff]
      %v1581 = vmul.f32 %v1577, %v1509
      %v1582 = vmul.f32 %v1578, %v1514
      %v1583 = vmax.f32 %v1579, %v1581
      %v1584 = vmax.f32 %v1580, %v1582
      %1585 = vst [vmem:[#allocation2] sm:$0xff] %v1583
      %1586 = vst [vmem:[#allocation2 + $0x8] sm:$0xff] %v1584
      %s1587 = scalar_lea.vmem %s346, 112
      %v1588 = vld [vmem:[%s1587] sm:$0xff]
      %v1589 = vld [vmem:[%s1587 + $0x8] sm:$0xff]
      %1590 = vset.pattern.permute.xlu0 0
      %1591 = vperm.xlu0 %1590, %v1588
      %v1592 = vpop.permute.xlu0 %1591
      %1593 = vset.pattern.permute.xlu0 0
      %1594 = vperm.xlu0 %1593, %v1589
      %v1595 = vpop.permute.xlu0 %1594
      %vm1596 = vcmp.eq.s32.totalorder %v1592, %v384
      %vm1597 = vcmp.eq.s32.totalorder %v1595, %v384
      %v1598 = vsel %vm1596, 1, 0
      %v1599 = vsel %vm1597, 1, 0
      %v1600 = vcvt.s32.f32 %v1598
      %v1601 = vcvt.s32.f32 %v1599
      %v1602 = vld [vmem:[%s352] sm:$0xff]
      %v1603 = vld [vmem:[%s352 + $0x8] sm:$0xff]
      %v1605 = vsel %vm406, %v1600, 0
      %v1608 = vsel %vm406, %v1601, 0
      %1610 = vmatprep.subr.mxu0 0.0
      %1611 = vmatpush1.msra.mxu0 0.0
      %1612 = vmatprep.subr.mxu0 0.0
      %1613 = vmatpush1.msra.mxu0 0.0
      %1614 = vmatprep.subr.mxu0 0.0
      %1615 = vmatpush1.msra.mxu0 0.0
      %1616 = vmatprep.subr.mxu0 0.0
      %1617 = vmatpush1.msra.mxu0 0.0
      %1618 = vmatprep.subr.mxu0 0.0
      %1619 = vmatpush1.msra.mxu0 0.0
      %1620 = vmatprep.subr.mxu0 0.0
      %1621 = vmatpush1.msra.mxu0 0.0
      %1622 = vmatprep.subr.mxu0 0.0
      %1623 = vmatpush1.msra.mxu0 0.0
      %1624 = vmatprep.subr.mxu0 0.0
      %1625 = vmatpush1.msra.mxu0 0.0
      %1626 = vmatprep.subr.mxu0 0.0
      %1627 = vmatpush1.msra.mxu0 0.0
      %1628 = vmatprep.subr.mxu0 0.0
      %1629 = vmatpush1.msra.mxu0 0.0
      %1630 = vmatprep.subr.mxu0 0.0
      %1631 = vmatpush1.msra.mxu0 0.0
      %1632 = vmatprep.subr.mxu0 0.0
      %1633 = vmatpush1.msra.mxu0 0.0
      %1634 = vmatprep.subr.mxu0 0.0
      %1635 = vmatpush1.msra.mxu0 0.0
      %1636 = vmatprep.subr.mxu0 0.0
      %1637 = vmatpush1.msra.mxu0 0.0
      %1638 = vmatprep.subr.mxu0 0.0
      %1639 = vmatpush1.msra.mxu0 %v1603
      %1640 = vmatprep.subr.mxu0 0.0
      %1641 = vmatpush1.msra.mxu0 %v1602
      %1642 = vmatprep.subr.mxu0 0.0
      %1643 = vmatpush2.msra.mxu0 0.0
      %1644 = vmatprep.subr.mxu0 0.0
      %1645 = vmatpush2.msra.mxu0 0.0
      %1646 = vmatprep.subr.mxu0 0.0
      %1647 = vmatpush2.msra.mxu0 0.0
      %1648 = vmatprep.subr.mxu0 0.0
      %1649 = vmatpush2.msra.mxu0 0.0
      %1650 = vmatprep.subr.mxu0 0.0
      %1651 = vmatpush2.msra.mxu0 0.0
      %1652 = vmatprep.subr.mxu0 0.0
      %1653 = vmatpush2.msra.mxu0 0.0
      %1654 = vmatprep.subr.mxu0 0.0
      %1655 = vmatpush2.msra.mxu0 0.0
      %1656 = vmatprep.subr.mxu0 0.0
      %1657 = vmatpush2.msra.mxu0 0.0
      %1658 = vmatprep.subr.mxu0 0.0
      %1659 = vmatpush2.msra.mxu0 0.0
      %1660 = vmatprep.subr.mxu0 0.0
      %1661 = vmatpush2.msra.mxu0 0.0
      %1662 = vmatprep.subr.mxu0 0.0
      %1663 = vmatpush2.msra.mxu0 0.0
      %1664 = vmatprep.subr.mxu0 0.0
      %1665 = vmatpush2.msra.mxu0 0.0
      %1666 = vmatprep.subr.mxu0 0.0
      %1667 = vmatpush2.msra.mxu0 0.0
      %1668 = vmatprep.subr.mxu0 0.0
      %1669 = vmatpush2.msra.mxu0 0.0
      %1670 = vmatprep.subr.mxu0 0.0
      %1671 = vmatpush2.msra.mxu0 0.0
      %1672 = vmatprep.subr.mxu0 0.0
      %1673 = vmatpush2.msra.mxu0 0.0
      %1674 = vmatprep.mubr.f32.mxu0 0.0
      %1675 = vmatmul.mubr.f32.gmra.mxu0 %v1605
      %v1676 = vpop.f32.mrf.mxu0
      %v1677 = vadd.f32 0.0, %v1676
      %v1678 = vpop.f32.mrf.mxu0
      %1679 = vmatprep.mubr.f32.mxu0 0.0
      %1680 = vmatmul.mubr.f32.gmra.mxu0 %v1608
      %v1681 = vpop.f32.mrf.mxu0
      %v1682 = vadd.f32 0.0, %v1681
      %v1683 = vpop.f32.mrf.mxu0
      %1684 = vdwg.mxu0
      %v1685 = vsub.f32 %v1677, %v491
      %v1686 = vsub.f32 %v1682, %v493
      %v1687 = vmul.f32 %v1685, %v1685
      %v1688 = vmul.f32 %v1686, %v1686
      %1691 = vrot.lane.b32.xlu0 %v1687, 104
      %v1692 = vpop.permute.xlu0 %1691
      %1693 = vrot.lane.b32.xlu0 %v1688, 104
      %v1694 = vpop.permute.xlu0 %1693
      %v1697 = vsel %vm508, %v1692, 0.0
      %1698 = vadd.xlane.f32.xlu0 %v1697
      %v1699 = vpop.xlane.xlu0 %1698
      %v1700 = vsel %vm508, %v1694, 0.0
      %1701 = vadd.xlane.f32.xlu0 %v1700
      %v1702 = vpop.xlane.xlu0 %1701
      %v1703 = vmax.f32 %v1699, 1e-24
      %v1704 = vmax.f32 %v1702, 1e-24
      %v1705 = vrsqrt.pop %v1703
      %v1706 = vrsqrt.pop %v1704
      %v1707 = vmul.f32 %v1685, %v1705
      %v1708 = vmul.f32 %v1686, %v1706
      %1710 = vset.pattern.permute.xlu0 24
      %1711 = vperm.xlu0 %1710, %v1707
      %v1712 = vpop.permute.xlu0 %1711
      %1715 = vset.pattern.permute.xlu0 24
      %1716 = vperm.xlu0 %1715, %v1708
      %v1717 = vpop.permute.xlu0 %1716
      %v1719 = vmul.f32 %v1712, %v534
      %v1720 = vmul.f32 %v1717, %v534
      %1721 = vset.pattern.permute.xlu0 25
      %1722 = vperm.xlu0 %1721, %v1707
      %v1723 = vpop.permute.xlu0 %1722
      %1725 = vset.pattern.permute.xlu0 25
      %1726 = vperm.xlu0 %1725, %v1708
      %v1727 = vpop.permute.xlu0 %1726
      %v1729 = vmul.f32 %v1723, %v548
      %v1730 = vmul.f32 %v1727, %v548
      %v1731 = vadd.f32 %v1719, %v1729
      %v1732 = vadd.f32 %v1720, %v1730
      %1733 = vset.pattern.permute.xlu0 26
      %1734 = vperm.xlu0 %1733, %v1707
      %v1735 = vpop.permute.xlu0 %1734
      %1737 = vset.pattern.permute.xlu0 26
      %1738 = vperm.xlu0 %1737, %v1708
      %v1739 = vpop.permute.xlu0 %1738
      %v1741 = vmul.f32 %v1735, %v564
      %v1742 = vmul.f32 %v1739, %v564
      %v1743 = vadd.f32 %v1731, %v1741
      %v1744 = vadd.f32 %v1732, %v1742
      %v1745 = vmax.f32 %v1743, 0.0
      %v1746 = vmax.f32 %v1744, 0.0
      %v1747 = vld [vmem:[#allocation2] sm:$0xff]
      %v1748 = vld [vmem:[#allocation2 + $0x8] sm:$0xff]
      %v1749 = vmul.f32 %v1745, %v1677
      %v1750 = vmul.f32 %v1746, %v1682
      %v1751 = vmax.f32 %v1747, %v1749
      %v1752 = vmax.f32 %v1748, %v1750
      %1753 = vst [vmem:[#allocation2] sm:$0xff] %v1751
      %1754 = vst [vmem:[#allocation2 + $0x8] sm:$0xff] %v1752
      %v1755 = vld [vmem:[#allocation2] sm:$0xff]
      %v1756 = vld [vmem:[#allocation2 + $0x8] sm:$0xff]
      %v1757 = vld [vmem:[%s5] sm:$0xff]
      %v1758 = vld [vmem:[%s5 + $0x8] sm:$0xff]
      %v1759 = vld [vmem:[%s5 + $0x10] sm:$0xff]
      %v1760 = vld [vmem:[%s5 + $0x18] sm:$0xff]
      %v1761 = vld [vmem:[%s5 + $0x20] sm:$0xff]
      %v1762 = vld [vmem:[%s5 + $0x28] sm:$0xff]
      %v1763 = vld [vmem:[%s5 + $0x30] sm:$0xff]
      %v1764 = vld [vmem:[%s5 + $0x38] sm:$0xff]
      %v1765 = vld [vmem:[%s5 + $0x40] sm:$0xff]
      %v1766 = vld [vmem:[%s5 + $0x48] sm:$0xff]
      %v1767 = vld [vmem:[%s5 + $0x50] sm:$0xff]
      %v1768 = vld [vmem:[%s5 + $0x58] sm:$0xff]
      %v1769 = vld [vmem:[%s5 + $0x60] sm:$0xff]
      %v1770 = vld [vmem:[%s5 + $0x68] sm:$0xff]
      %v1771 = vld [vmem:[%s5 + $0x70] sm:$0xff]
      %v1772 = vld [vmem:[%s5 + $0x78] sm:$0xff]
      %1773 = vmatprep.subr.mxu0 0.0
      %1774 = vmatpush1.msra.mxu0 %v1772
      %1775 = vmatprep.subr.mxu0 0.0
      %1776 = vmatpush1.msra.mxu0 %v1771
      %1777 = vmatprep.subr.mxu0 0.0
      %1778 = vmatpush1.msra.mxu0 %v1770
      %1779 = vmatprep.subr.mxu0 0.0
      %1780 = vmatpush1.msra.mxu0 %v1769
      %1781 = vmatprep.subr.mxu0 0.0
      %1782 = vmatpush1.msra.mxu0 %v1768
      %1783 = vmatprep.subr.mxu0 0.0
      %1784 = vmatpush1.msra.mxu0 %v1767
      %1785 = vmatprep.subr.mxu0 0.0
      %1786 = vmatpush1.msra.mxu0 %v1766
      %1787 = vmatprep.subr.mxu0 0.0
      %1788 = vmatpush1.msra.mxu0 %v1765
      %1789 = vmatprep.subr.mxu0 0.0
      %1790 = vmatpush1.msra.mxu0 %v1764
      %1791 = vmatprep.subr.mxu0 0.0
      %1792 = vmatpush1.msra.mxu0 %v1763
      %1793 = vmatprep.subr.mxu0 0.0
      %1794 = vmatpush1.msra.mxu0 %v1762
      %1795 = vmatprep.subr.mxu0 0.0
      %1796 = vmatpush1.msra.mxu0 %v1761
      %1797 = vmatprep.subr.mxu0 0.0
      %1798 = vmatpush1.msra.mxu0 %v1760
      %1799 = vmatprep.subr.mxu0 0.0
      %1800 = vmatpush1.msra.mxu0 %v1759
      %1801 = vmatprep.subr.mxu0 0.0
      %1802 = vmatpush1.msra.mxu0 %v1758
      %1803 = vmatprep.subr.mxu0 0.0
      %1804 = vmatpush1.msra.mxu0 %v1757
      %1805 = vmatprep.subr.mxu0 0.0
      %1806 = vmatpush2.msra.mxu0 0.0
      %1807 = vmatprep.subr.mxu0 0.0
      %1808 = vmatpush2.msra.mxu0 0.0
      %1809 = vmatprep.subr.mxu0 0.0
      %1810 = vmatpush2.msra.mxu0 0.0
      %1811 = vmatprep.subr.mxu0 0.0
      %1812 = vmatpush2.msra.mxu0 0.0
      %1813 = vmatprep.subr.mxu0 0.0
      %1814 = vmatpush2.msra.mxu0 0.0
      %1815 = vmatprep.subr.mxu0 0.0
      %1816 = vmatpush2.msra.mxu0 0.0
      %1817 = vmatprep.subr.mxu0 0.0
      %1818 = vmatpush2.msra.mxu0 0.0
      %1819 = vmatprep.subr.mxu0 0.0
      %1820 = vmatpush2.msra.mxu0 0.0
      %1821 = vmatprep.subr.mxu0 0.0
      %1822 = vmatpush2.msra.mxu0 0.0
      %1823 = vmatprep.subr.mxu0 0.0
      %1824 = vmatpush2.msra.mxu0 0.0
      %1825 = vmatprep.subr.mxu0 0.0
      %1826 = vmatpush2.msra.mxu0 0.0
      %1827 = vmatprep.subr.mxu0 0.0
      %1828 = vmatpush2.msra.mxu0 0.0
      %1829 = vmatprep.subr.mxu0 0.0
      %1830 = vmatpush2.msra.mxu0 0.0
      %1831 = vmatprep.subr.mxu0 0.0
      %1832 = vmatpush2.msra.mxu0 0.0
      %1833 = vmatprep.subr.mxu0 0.0
      %1834 = vmatpush2.msra.mxu0 0.0
      %1835 = vmatprep.subr.mxu0 0.0
      %1836 = vmatpush2.msra.mxu0 0.0
      %1837 = vmatprep.mubr.f32.mxu0 0.0
      %1838 = vmatmul.mubr.f32.gmra.mxu0 %v1755
      %v1839 = vpop.f32.mrf.mxu0
      %v1840 = vadd.f32 0.0, %v1839
      %v1841 = vpop.f32.mrf.mxu0
      %1842 = vmatprep.mubr.f32.mxu0 0.0
      %1843 = vmatmul.mubr.f32.gmra.mxu0 %v1756
      %v1844 = vpop.f32.mrf.mxu0
      %v1845 = vadd.f32 0.0, %v1844
      %v1846 = vpop.f32.mrf.mxu0
      %1847 = vdwg.mxu0
      %v1848 = vld [vmem:[%s371] sm:$0xff]
      %v1849 = vld [vmem:[%s371 + $0x8] sm:$0xff]
      %v1850 = vadd.f32 %v1848, %v1840
      %v1851 = vadd.f32 %v1849, %v1845
      %vm1852 = vcmask 64512
      %1853 = vst.msk [vmem:[%s381] sm:$0xff] %vm1852, %v1850
      %1854 = vst.msk [vmem:[%s381 + $0x8] sm:$0xff] %vm1852, %v1851
      %s1855 = smul.u32 2, %s22
      %p1856 = scmp.lt.s32.totalorder %s21, 1
      %s1857 = scalar_select %p1856, %s21, 1
      %p1858 = scmp.lt.s32.totalorder %s1855, 1
      %s1859 = scalar_select %p1858, %s1855, 1
      %s1860 = smul.addr %s1857, 2
      %s1861 = sadd.s32 %s1859, %s1860
      %s1862 = smul.addr %s1861, 8
      %s1863 = scalar_lea.vmem %s6, %s1862
      // Predicated region
      $region45: #{tpu_custom_call.1} parent=43 // pred_check
        %p1864 = pneg %p201
      $region46: #{tpu_custom_call.1} parent=43 // pred_check_branch
        %1866 = sbr.rel (%p1864) target = $region48
      $region47: #{tpu_custom_call.1} parent=43 // pred_region
        %s1867 = smul.u32 2, %s22
      $region48: #{tpu_custom_call.1} parent=43 // pred_fallthru
        _
    $region44: #{tpu_custom_call.1} parent=5 // pred_fallthru
      _
    %p1868 = scmp.le.s32.totalorder 2, %s12
    // Predicated region
    $region49: #{tpu_custom_call.1} parent=5 // pred_check
      %p1869 = pneg %p1868
    $region50: #{tpu_custom_call.1} parent=5 // pred_check_branch
      %1871 = sbr.rel (%p1869) target = $region52
    $region51: #{tpu_custom_call.1} parent=5 // pred_region
      %s1872 = ssub.s32 %s12, 2
      // Predicated region
      $region53: #{tpu_custom_call.1} parent=51 // pred_check
        %p1873 = pneg %p207
      $region54: #{tpu_custom_call.1} parent=51 // pred_check_branch
        %1875 = sbr.rel (%p1873) target = $region56
      $region55: #{tpu_custom_call.1} parent=51 // pred_region
        %s1876 = smul.u32 2, %s24
        %p1877 = scmp.lt.s32.totalorder %s23, 1
        %s1878 = scalar_select %p1877, %s23, 1
        %p1879 = scmp.lt.s32.totalorder %s1876, 1
        %s1880 = scalar_select %p1879, %s1876, 1
        %s1881 = smul.addr %s1878, 2
        %s1882 = sadd.s32 %s1880, %s1881
        %s1883 = smul.addr %s1882, 8
        %s1884 = scalar_lea.vmem %s6, %s1883
      $region56: #{tpu_custom_call.1} parent=51 // pred_fallthru
        _
    $region52: #{tpu_custom_call.1} parent=5 // pred_fallthru
      _
  $region6: #{tpu_custom_call.1} parent=0 // loop_footer
    %s16 = sadd.s32 1, %s12
  $region7: #{tpu_custom_call.1} parent=0 // loop_footer_branch
    %11 = sbr.rel target = $region3
  $region8: #{tpu_custom_call.1} parent=0 // loop_exit
    _

</llo_original>
